<compile_context>
chip_gen: v7x
topology: tpu7x:2x2x1
jax: 0.10.0
libtpu: 0.0.40
codegen_flags: <defaults>
</compile_context>

<pallas_src>
import functools

import jax
import jax.numpy as jnp
from jax.experimental import pallas as pl
from jax.experimental.pallas import tpu as pltpu


# ----------------------------------------------------------------------------
# Fused kernel: grid axis = fusion layer index.
#   step 0          : res_z = res @ enc_w + enc_b ; z <- z0        (pl.when)
#   every step l    : one cross-attention + FFN fusion layer on z  (weights[l])
#   last step       : Student-t soft assignment, write z_out, q_out (pl.when)
# ----------------------------------------------------------------------------
def fused_cluster_kernel(
    z0_ref, res_ref, enc_w_ref, enc_b_ref, mu_t_ref,       # layer-invariant inputs
    attn_w_ref, w1_ref, b1_ref, w2_ref, b2_ref,             # per-layer (leading L squeezed)
    z_out_ref, q_out_ref,                                   # outputs (written on last step)
    z_scr, rz_scr,                                          # VMEM scratch (persist over grid)
    *, nheads, alpha, z_dim):
    l = pl.program_id(0)
    nlayers = pl.num_programs(0)

    # --- step 0: encoder stand-in + load initial z into VMEM scratch ---------
    @pl.when(l == 0)
    def _init():
        z_scr[...] = z0_ref[...]
        rz_scr[...] = (
            jnp.dot(res_ref[...], enc_w_ref[...], preferred_element_type=jnp.float32)
            + enc_b_ref[...]
        )

    z = z_scr[...]          # (N, D)
    kv = rz_scr[...]        # (N, D)
    n = z.shape[0]

    # --- cross-attention (Q from z, K/V from res_z), head-batched ------------
    # attn_w layout (packed host-side): (4*H, D, dh) = [Wq_h*scale | Wk_h | Wv_h | Wo_h^T]
    w_all = attn_w_ref[...]
    wq = w_all[0 * nheads:1 * nheads]          # (H, D, dh)   (scale pre-folded)
    wk = w_all[1 * nheads:2 * nheads]
    wv = w_all[2 * nheads:3 * nheads]
    wo_t = w_all[3 * nheads:4 * nheads]        # (H, D, dh)  == per-head Wo rows, transposed

    zb = jnp.broadcast_to(z, (nheads, n, z_dim))    # (H, N, D)
    kvb = jnp.broadcast_to(kv, (nheads, n, z_dim))

    qh = jnp.einsum('hnd,hdk->hnk', zb, wq, preferred_element_type=jnp.float32)
    kh = jnp.einsum('hnd,hdk->hnk', kvb, wk, preferred_element_type=jnp.float32)
    vh = jnp.einsum('hnd,hdk->hnk', kvb, wv, preferred_element_type=jnp.float32)

    s = jnp.einsum('hnk,hmk->hnm', qh, kh, preferred_element_type=jnp.float32)
    s = s - jnp.max(s, axis=-1, keepdims=True)
    p = jnp.exp(s)
    p = p * pl.reciprocal(jnp.sum(p, axis=-1, keepdims=True), approx=True)

    ctx = jnp.einsum('hnm,hmk->hnk', p, vh, preferred_element_type=jnp.float32)   # (H,N,dh)
    # output projection: sum_h ctx_h @ Wo[h*dh:(h+1)*dh, :]  (Wo rows pre-transposed)
    proj = jnp.einsum('hnk,hdk->hnd', ctx, wo_t, preferred_element_type=jnp.float32)
    z = z + jnp.sum(proj, axis=0)

    # --- ReLU FFN with residual ----------------------------------------------
    h1 = jnp.maximum(
        jnp.dot(z, w1_ref[...], preferred_element_type=jnp.float32) + b1_ref[...],
        0.0,
    )
    z = z + jnp.dot(h1, w2_ref[...], preferred_element_type=jnp.float32) + b2_ref[...]
    z_scr[...] = z

    # --- last step: Student-t soft assignment + write outputs ----------------
    @pl.when(l == nlayers - 1)
    def _finalize():
        mu_t = mu_t_ref[...]                                        # (D, K)
        z2 = jnp.sum(z * z, axis=1, keepdims=True)                  # (N, 1)
        mu2 = jnp.sum(mu_t * mu_t, axis=0, keepdims=True)           # (1, K)
        zmu = jnp.dot(z, mu_t, preferred_element_type=jnp.float32)  # (N, K)
        d2 = jnp.maximum(z2 + mu2 - 2.0 * zmu, 0.0)
        base = pl.reciprocal(1.0 + d2 * (1.0 / alpha) + 1e-8, approx=True)
        expo = alpha + 1.0
        if expo == 2.0:                      # alpha == 1: no transcendentals needed
            qn = base * base
        else:
            qn = jnp.exp(expo * jnp.log(base))
        # the spec's "/ 2.0" cancels exactly in the row normalization -> omitted
        qn = qn * pl.reciprocal(jnp.sum(qn, axis=1, keepdims=True), approx=True)
        z_out_ref[...] = z
        q_out_ref[...] = qn


# ----------------------------------------------------------------------------
# Host-side parameter init (deterministic, synthetic) and one-time packing.
# ----------------------------------------------------------------------------
def init_params(key, *, res_dim, z_dim, num_types, hidden_dim, num_layers):
    def dense(k, fan_in, fan_out):
        return 0.02 * jax.random.normal(k, (fan_in, fan_out), jnp.float32)

    keys = jax.random.split(key, 2 + 6 * num_layers + 1)
    params = {
        "enc_w": dense(keys[0], res_dim, z_dim),
        "enc_b": jnp.zeros((z_dim,), jnp.float32),
        "mu": jax.random.normal(keys[1], (num_types, z_dim), jnp.float32),
        "fusion": [],
    }
    ki = 2
    for _ in range(num_layers):
        params["fusion"].append({
            "wq": dense(keys[ki + 0], z_dim, z_dim),
            "wk": dense(keys[ki + 1], z_dim, z_dim),
            "wv": dense(keys[ki + 2], z_dim, z_dim),
            "wo": dense(keys[ki + 3], z_dim, z_dim),
            "w1": dense(keys[ki + 4], z_dim, hidden_dim),
            "b1": jnp.zeros((hidden_dim,), jnp.float32),
            "w2": dense(keys[ki + 5], hidden_dim, z_dim),
            "b2": jnp.zeros((z_dim,), jnp.float32),
        })
        ki += 6
    return params


def pack_params(params, *, nheads):
    """One-time host-side packing: per-head weight layout + stacked L axis."""
    layers = params["fusion"]
    d = layers[0]["wq"].shape[0]
    dh = d // nheads
    scale = 1.0 / float(dh) ** 0.5           # fold softmax scale into Wq
    attn_w, w1s, b1s, w2s, b2s = [], [], [], [], []
    for lp in layers:
        # (D, D) -> per-head (H, D, dh); Wo rows per head, transposed -> (H, D, dh)
        wq_h = (lp["wq"] * scale).reshape(d, nheads, dh).transpose(1, 0, 2)
        wk_h = lp["wk"].reshape(d, nheads, dh).transpose(1, 0, 2)
        wv_h = lp["wv"].reshape(d, nheads, dh).transpose(1, 0, 2)
        wo_t = lp["wo"].reshape(nheads, dh, d).transpose(0, 2, 1)
        attn_w.append(jnp.concatenate([wq_h, wk_h, wv_h, wo_t], axis=0))  # (4H, D, dh)
        w1s.append(lp["w1"])
        b1s.append(lp["b1"].reshape(1, -1))
        w2s.append(lp["w2"])
        b2s.append(lp["b2"].reshape(1, -1))
    return {
        "enc_w": params["enc_w"],                     # (R, D)
        "enc_b": params["enc_b"].reshape(1, -1),      # (1, D)
        "mu_t": params["mu"].T,                       # (D, K)  (avoids in-kernel transpose)
        "attn_w": jnp.stack(attn_w, 0),               # (L, 4H, D, dh)
        "w1": jnp.stack(w1s, 0),                      # (L, D, HID)
        "b1": jnp.stack(b1s, 0),                      # (L, 1, HID)
        "w2": jnp.stack(w2s, 0),                      # (L, HID, D)
        "b2": jnp.stack(b2s, 0),                      # (L, 1, D)
    }


# ----------------------------------------------------------------------------
# Wrapper: single pallas_call for the full forward.
# ----------------------------------------------------------------------------
def cluster_forward(packed, z, res, *, alpha, nheads):
    n, d = z.shape
    r = res.shape[1]
    k = packed["mu_t"].shape[1]
    num_layers, _, _, dh = packed["attn_w"].shape
    hid = packed["w1"].shape[2]

    kern = functools.partial(
        fused_cluster_kernel, nheads=nheads, alpha=float(alpha), z_dim=d)
    const2 = lambda l: (0, 0)

    z_out, q_out = pl.pallas_call(
        kern,
        out_shape=(jax.ShapeDtypeStruct((n, d), jnp.float32),
                   jax.ShapeDtypeStruct((n, k), jnp.float32)),
        grid_spec=pltpu.PrefetchScalarGridSpec(
            num_scalar_prefetch=0,
            grid=(num_layers,),
            in_specs=[
                pl.BlockSpec((n, d), const2),                                     # z0
                pl.BlockSpec((n, r), const2),                                     # res
                pl.BlockSpec((r, d), const2),                                     # enc_w
                pl.BlockSpec((1, d), const2),                                     # enc_b
                pl.BlockSpec((d, k), const2),                                     # mu^T
                pl.BlockSpec((None, 4 * nheads, d, dh), lambda l: (l, 0, 0, 0)),  # attn_w[l]
                pl.BlockSpec((None, d, hid), lambda l: (l, 0, 0)),                # w1[l]
                pl.BlockSpec((None, 1, hid), lambda l: (l, 0, 0)),                # b1[l]
                pl.BlockSpec((None, hid, d), lambda l: (l, 0, 0)),                # w2[l]
                pl.BlockSpec((None, 1, d), lambda l: (l, 0, 0)),                  # b2[l]
            ],
            out_specs=[
                pl.BlockSpec((n, d), const2),     # z   (resident over all layers)
                pl.BlockSpec((n, k), const2),     # q
            ],
            scratch_shapes=[
                pltpu.VMEM((n, d), jnp.float32),  # z      (persists over grid)
                pltpu.VMEM((n, d), jnp.float32),  # res_z  (persists over grid)
            ],
        ),
        compiler_params=pltpu.CompilerParams(
            # layer axis is sequentially dependent through the z scratch
            dimension_semantics=("arbitrary",),
        ),
    )(
        z, res, packed["enc_w"], packed["enc_b"], packed["mu_t"],
        packed["attn_w"], packed["w1"], packed["b1"], packed["w2"], packed["b2"],
    )
    return z_out, q_out


if __name__ == "__main__":
    # Small shapes consistent with the module: N cells, res features, z_dim latent.
    N, RES_DIM, Z_DIM = 8, 16, 32
    NUM_TYPES, NHEADS, HIDDEN, NUM_LAYERS = 4, 4, 64, 3
    ALPHA = 1.0

    key = jax.random.PRNGKey(0)
    k_z, k_res, k_p = jax.random.split(key, 3)
    z_in = jax.random.normal(k_z, (N, Z_DIM), jnp.float32)
    res_in = jax.random.normal(k_res, (N, RES_DIM), jnp.float32)

    raw_params = init_params(
        k_p, res_dim=RES_DIM, z_dim=Z_DIM, num_types=NUM_TYPES,
        hidden_dim=HIDDEN, num_layers=NUM_LAYERS,
    )
    packed = pack_params(raw_params, nheads=NHEADS)   # one-time host-side packing

    z_out, q_out = cluster_forward(packed, z_in, res_in, alpha=ALPHA, nheads=NHEADS)
    jax.block_until_ready((z_out, q_out))

    assert z_out.shape == (N, Z_DIM)
    assert q_out.shape == (N, NUM_TYPES)
    assert bool(jnp.all(jnp.isfinite(z_out))) and bool(jnp.all(jnp.isfinite(q_out)))
    # soft assignments: each row ~sums to 1 (approx reciprocal => loose tolerance)
    assert bool(jnp.all(jnp.abs(jnp.sum(q_out, axis=1) - 1.0) < 5e-2))
    print("KERNEL_OK")
</pallas_src>

<mosaic_0001>
module attributes {stable_mosaic.version = 11 : i64} {
  func.func @fused_cluster_kernel(%arg0: i32, %arg1: memref<8x32xf32, #tpu.memory_space<vmem>>, %arg2: memref<8x16xf32, #tpu.memory_space<vmem>>, %arg3: memref<16x32xf32, #tpu.memory_space<vmem>>, %arg4: memref<1x32xf32, #tpu.memory_space<vmem>>, %arg5: memref<32x4xf32, #tpu.memory_space<vmem>>, %arg6: memref<1x16x32x8xf32, #tpu.memory_space<vmem>>, %arg7: memref<1x32x64xf32, #tpu.memory_space<vmem>>, %arg8: memref<1x1x64xf32, #tpu.memory_space<vmem>>, %arg9: memref<1x64x32xf32, #tpu.memory_space<vmem>>, %arg10: memref<1x1x32xf32, #tpu.memory_space<vmem>>, %arg11: memref<8x32xf32, #tpu.memory_space<vmem>>, %arg12: memref<8x4xf32, #tpu.memory_space<vmem>>, %arg13: memref<8x32xf32, #tpu.memory_space<vmem>>, %arg14: memref<8x32xf32, #tpu.memory_space<vmem>>) attributes {dimension_semantics = [#tpu.dimension_semantics<arbitrary>], iteration_bounds = array<i64: 3>, scalar_prefetch = 0 : i64, scratch_operands = 2 : i64, tpu.core_type = #tpu.core_type<tc>, window_params = [{pipeline_mode = #tpu.pipeline_mode<synchronous>, transform_indices = @transform_0, window_bounds = array<i64: 8, 32>}, {pipeline_mode = #tpu.pipeline_mode<synchronous>, transform_indices = @transform_1, window_bounds = array<i64: 8, 16>}, {pipeline_mode = #tpu.pipeline_mode<synchronous>, transform_indices = @transform_2, window_bounds = array<i64: 16, 32>}, {pipeline_mode = #tpu.pipeline_mode<synchronous>, transform_indices = @transform_3, window_bounds = array<i64: 1, 32>}, {pipeline_mode = #tpu.pipeline_mode<synchronous>, transform_indices = @transform_4, window_bounds = array<i64: 32, 4>}, {transform_indices = @transform_5, window_bounds = array<i64: 1, 16, 32, 8>}, {transform_indices = @transform_6, window_bounds = array<i64: 1, 32, 64>}, {transform_indices = @transform_7, window_bounds = array<i64: 1, 1, 64>}, {transform_indices = @transform_8, window_bounds = array<i64: 1, 64, 32>}, {transform_indices = @transform_9, window_bounds = array<i64: 1, 1, 32>}, {pipeline_mode = #tpu.pipeline_mode<synchronous>, transform_indices = @transform_10, window_bounds = array<i64: 8, 32>}, {pipeline_mode = #tpu.pipeline_mode<synchronous>, transform_indices = @transform_11, window_bounds = array<i64: 8, 4>}]} {
    %c0_i32 = arith.constant 0 : i32
    %0 = arith.cmpi eq, %arg0, %c0_i32 : i32
    %1 = arith.extui %0 : i1 to i32
    %c0_i32_0 = arith.constant 0 : i32
    %2 = arith.cmpi ne, %1, %c0_i32_0 : i32
    scf.if %2 {
      %c0_34 = arith.constant 0 : index
      %c0_35 = arith.constant 0 : index
      %54 = vector.load %arg1[%c0_34, %c0_35] : memref<8x32xf32, #tpu.memory_space<vmem>>, vector<8x32xf32>
      %c0_36 = arith.constant 0 : index
      %c0_37 = arith.constant 0 : index
      %55 = vector.load %arg13[%c0_36, %c0_37] : memref<8x32xf32, #tpu.memory_space<vmem>>, vector<8x32xf32>
      tpu.vector_store %arg13[%c0_36, %c0_37], %54 {strides = array<i32>} : memref<8x32xf32, #tpu.memory_space<vmem>>, vector<8x32xf32>,
      %c0_38 = arith.constant 0 : index
      %c0_39 = arith.constant 0 : index
      %56 = vector.load %arg2[%c0_38, %c0_39] : memref<8x16xf32, #tpu.memory_space<vmem>>, vector<8x16xf32>
      %c0_40 = arith.constant 0 : index
      %c0_41 = arith.constant 0 : index
      %57 = vector.load %arg3[%c0_40, %c0_41] : memref<16x32xf32, #tpu.memory_space<vmem>>, vector<16x32xf32>
      %cst_42 = arith.constant dense<0.000000e+00> : vector<8x32xf32>
      %58 = tpu.matmul %56, %57, %cst_42 {dimension_numbers = #tpu.dot_dimension_numbers<[1], [0], [0], [1], [0, 0, 1, 1], [], []>} : vector<8x16xf32>, vector<16x32xf32>, vector<8x32xf32> -> vector<8x32xf32>
      %c0_43 = arith.constant 0 : index
      %c0_44 = arith.constant 0 : index
      %59 = vector.load %arg4[%c0_43, %c0_44] : memref<1x32xf32, #tpu.memory_space<vmem>>, vector<1x32xf32>
      %60 = vector.broadcast %59 : vector<1x32xf32> to vector<8x32xf32>
      %61 = arith.addf %58, %60 : vector<8x32xf32>
      %c0_45 = arith.constant 0 : index
      %c0_46 = arith.constant 0 : index
      %62 = vector.load %arg14[%c0_45, %c0_46] : memref<8x32xf32, #tpu.memory_space<vmem>>, vector<8x32xf32>
      tpu.vector_store %arg14[%c0_45, %c0_46], %61 {strides = array<i32>} : memref<8x32xf32, #tpu.memory_space<vmem>>, vector<8x32xf32>,
    } else {
    }
    %c0 = arith.constant 0 : index
    %c0_1 = arith.constant 0 : index
    %3 = vector.load %arg13[%c0, %c0_1] : memref<8x32xf32, #tpu.memory_space<vmem>>, vector<8x32xf32>
    %c0_2 = arith.constant 0 : index
    %c0_3 = arith.constant 0 : index
    %4 = vector.load %arg14[%c0_2, %c0_3] : memref<8x32xf32, #tpu.memory_space<vmem>>, vector<8x32xf32>
    %c0_4 = arith.constant 0 : index
    %c0_5 = arith.constant 0 : index
    %c0_6 = arith.constant 0 : index
    %c0_7 = arith.constant 0 : index
    %5 = vector.load %arg6[%c0_4, %c0_5, %c0_6, %c0_7] : memref<1x16x32x8xf32, #tpu.memory_space<vmem>>, vector<1x16x32x8xf32>
    %6 = vector.shape_cast %5 : vector<1x16x32x8xf32> to vector<16x32x8xf32>
    %7 = vector.extract_strided_slice %6 {offsets = [0, 0, 0], sizes = [4, 32, 8], strides = [1, 1, 1]} : vector<16x32x8xf32> to vector<4x32x8xf32>
    %8 = vector.extract_strided_slice %6 {offsets = [4, 0, 0], sizes = [4, 32, 8], strides = [1, 1, 1]} : vector<16x32x8xf32> to vector<4x32x8xf32>
    %9 = vector.extract_strided_slice %6 {offsets = [8, 0, 0], sizes = [4, 32, 8], strides = [1, 1, 1]} : vector<16x32x8xf32> to vector<4x32x8xf32>
    %10 = vector.extract_strided_slice %6 {offsets = [12, 0, 0], sizes = [4, 32, 8], strides = [1, 1, 1]} : vector<16x32x8xf32> to vector<4x32x8xf32>
    %11 = vector.shape_cast %3 : vector<8x32xf32> to vector<1x8x32xf32>
    %12 = vector.broadcast %11 : vector<1x8x32xf32> to vector<4x8x32xf32>
    %13 = vector.shape_cast %4 : vector<8x32xf32> to vector<1x8x32xf32>
    %14 = vector.broadcast %13 : vector<1x8x32xf32> to vector<4x8x32xf32>
    "tpu.trace_start"() <{level = 10 : i32, message = "hnd,hdk->hnk"}> : () -> ()
    %cst = arith.constant dense<0.000000e+00> : vector<4x8x8xf32>
    %15 = tpu.matmul %12, %7, %cst {dimension_numbers = #tpu.dot_dimension_numbers<[2], [1], [1], [2], [0, 0, 0, 1, 1, 2], [0], [0]>} : vector<4x8x32xf32>, vector<4x32x8xf32>, vector<4x8x8xf32> -> vector<4x8x8xf32>
    %cst_8 = arith.constant dense<0.000000e+00> : vector<4x8x8xf32>
    %16 = tpu.matmul %14, %8, %cst_8 {dimension_numbers = #tpu.dot_dimension_numbers<[2], [1], [1], [2], [0, 0, 0, 1, 1, 2], [0], [0]>} : vector<4x8x32xf32>, vector<4x32x8xf32>, vector<4x8x8xf32> -> vector<4x8x8xf32>
    %cst_9 = arith.constant dense<0.000000e+00> : vector<4x8x8xf32>
    %17 = tpu.matmul %14, %9, %cst_9 {dimension_numbers = #tpu.dot_dimension_numbers<[2], [1], [1], [2], [0, 0, 0, 1, 1, 2], [0], [0]>} : vector<4x8x32xf32>, vector<4x32x8xf32>, vector<4x8x8xf32> -> vector<4x8x8xf32>
    "tpu.trace_stop"() : () -> ()
    "tpu.trace_start"() <{level = 10 : i32, message = "hnk,hmk->hnm"}> : () -> ()
    %cst_10 = arith.constant dense<0.000000e+00> : vector<4x8x8xf32>
    %18 = tpu.matmul %15, %16, %cst_10 {dimension_numbers = #tpu.dot_dimension_numbers<[2], [2], [1], [1], [0, 0, 0, 1, 1, 1], [0], [0]>} : vector<4x8x8xf32>, vector<4x8x8xf32>, vector<4x8x8xf32> -> vector<4x8x8xf32>
    "tpu.trace_stop"() : () -> ()
    %cst_11 = arith.constant dense<0xFF800000> : vector<4x8xf32>
    %19 = vector.multi_reduction <maximumf>, %18, %cst_11 [2] : vector<4x8x8xf32> to vector<4x8xf32>
    %20 = vector.shape_cast %19 : vector<4x8xf32> to vector<4x8x1xf32>
    %21 = vector.broadcast %20 : vector<4x8x1xf32> to vector<4x8x8xf32>
    %22 = arith.subf %18, %21 : vector<4x8x8xf32>
    %23 = math.exp %22 : vector<4x8x8xf32>
    %cst_12 = arith.constant dense<0.000000e+00> : vector<4x8xf32>
    %24 = vector.multi_reduction <add>, %23, %cst_12 [2] : vector<4x8x8xf32> to vector<4x8xf32>
    %25 = vector.shape_cast %24 : vector<4x8xf32> to vector<4x8x1xf32>
    %26 = tpu.reciprocal %25 {approx = true} : vector<4x8x1xf32> -> vector<4x8x1xf32>
    %27 = vector.broadcast %26 : vector<4x8x1xf32> to vector<4x8x8xf32>
    %28 = arith.mulf %23, %27 : vector<4x8x8xf32>
    "tpu.trace_start"() <{level = 10 : i32, message = "hnm,hmk->hnk"}> : () -> ()
    %cst_13 = arith.constant dense<0.000000e+00> : vector<4x8x8xf32>
    %29 = tpu.matmul %28, %17, %cst_13 {dimension_numbers = #tpu.dot_dimension_numbers<[2], [1], [1], [2], [0, 0, 0, 1, 1, 2], [0], [0]>} : vector<4x8x8xf32>, vector<4x8x8xf32>, vector<4x8x8xf32> -> vector<4x8x8xf32>
    "tpu.trace_stop"() : () -> ()
    "tpu.trace_start"() <{level = 10 : i32, message = "hnk,hdk->hnd"}> : () -> ()
    %cst_14 = arith.constant dense<0.000000e+00> : vector<4x8x32xf32>
    %30 = tpu.matmul %29, %10, %cst_14 {dimension_numbers = #tpu.dot_dimension_numbers<[2], [2], [1], [1], [0, 0, 0, 1, 1, 1], [0], [0]>} : vector<4x8x8xf32>, vector<4x32x8xf32>, vector<4x8x32xf32> -> vector<4x8x32xf32>
    "tpu.trace_stop"() : () -> ()
    %cst_15 = arith.constant dense<0.000000e+00> : vector<8x32xf32>
    %31 = vector.multi_reduction <add>, %30, %cst_15 [0] : vector<4x8x32xf32> to vector<8x32xf32>
    %32 = arith.addf %3, %31 : vector<8x32xf32>
    %c0_16 = arith.constant 0 : index
    %c0_17 = arith.constant 0 : index
    %c0_18 = arith.constant 0 : index
    %33 = vector.load %arg7[%c0_16, %c0_17, %c0_18] : memref<1x32x64xf32, #tpu.memory_space<vmem>>, vector<1x32x64xf32>
    %34 = vector.shape_cast %33 : vector<1x32x64xf32> to vector<32x64xf32>
    %cst_19 = arith.constant dense<0.000000e+00> : vector<8x64xf32>
    %35 = tpu.matmul %32, %34, %cst_19 {dimension_numbers = #tpu.dot_dimension_numbers<[1], [0], [0], [1], [0, 0, 1, 1], [], []>} : vector<8x32xf32>, vector<32x64xf32>, vector<8x64xf32> -> vector<8x64xf32>
    %c0_20 = arith.constant 0 : index
    %c0_21 = arith.constant 0 : index
    %c0_22 = arith.constant 0 : index
    %36 = vector.load %arg8[%c0_20, %c0_21, %c0_22] : memref<1x1x64xf32, #tpu.memory_space<vmem>>, vector<1x1x64xf32>
    %37 = vector.shape_cast %36 : vector<1x1x64xf32> to vector<1x64xf32>
    %38 = vector.broadcast %37 : vector<1x64xf32> to vector<8x64xf32>
    %39 = arith.addf %35, %38 : vector<8x64xf32>
    %cst_23 = arith.constant 0.000000e+00 : f32
    %40 = vector.broadcast %cst_23 : f32 to vector<8x64xf32>
    %41 = arith.maximumf %39, %40 : vector<8x64xf32>
    %c0_24 = arith.constant 0 : index
    %c0_25 = arith.constant 0 : index
    %c0_26 = arith.constant 0 : index
    %42 = vector.load %arg9[%c0_24, %c0_25, %c0_26] : memref<1x64x32xf32, #tpu.memory_space<vmem>>, vector<1x64x32xf32>
    %43 = vector.shape_cast %42 : vector<1x64x32xf32> to vector<64x32xf32>
    %cst_27 = arith.constant dense<0.000000e+00> : vector<8x32xf32>
    %44 = tpu.matmul %41, %43, %cst_27 {dimension_numbers = #tpu.dot_dimension_numbers<[1], [0], [0], [1], [0, 0, 1, 1], [], []>} : vector<8x64xf32>, vector<64x32xf32>, vector<8x32xf32> -> vector<8x32xf32>
    %45 = arith.addf %32, %44 : vector<8x32xf32>
    %c0_28 = arith.constant 0 : index
    %c0_29 = arith.constant 0 : index
    %c0_30 = arith.constant 0 : index
    %46 = vector.load %arg10[%c0_28, %c0_29, %c0_30] : memref<1x1x32xf32, #tpu.memory_space<vmem>>, vector<1x1x32xf32>
    %47 = vector.shape_cast %46 : vector<1x1x32xf32> to vector<1x32xf32>
    %48 = vector.broadcast %47 : vector<1x32xf32> to vector<8x32xf32>
    %49 = arith.addf %45, %48 : vector<8x32xf32>
    %c0_31 = arith.constant 0 : index
    %c0_32 = arith.constant 0 : index
    %50 = vector.load %arg13[%c0_31, %c0_32] : memref<8x32xf32, #tpu.memory_space<vmem>>, vector<8x32xf32>
    tpu.vector_store %arg13[%c0_31, %c0_32], %49 {strides = array<i32>} : memref<8x32xf32, #tpu.memory_space<vmem>>, vector<8x32xf32>,
    %c2_i32 = arith.constant 2 : i32
    %51 = arith.cmpi eq, %arg0, %c2_i32 : i32
    %52 = arith.extui %51 : i1 to i32
    %c0_i32_33 = arith.constant 0 : i32
    %53 = arith.cmpi ne, %52, %c0_i32_33 : i32
    scf.if %53 {
      %c0_34 = arith.constant 0 : index
      %c0_35 = arith.constant 0 : index
      %54 = vector.load %arg5[%c0_34, %c0_35] : memref<32x4xf32, #tpu.memory_space<vmem>>, vector<32x4xf32>
      %55 = arith.mulf %49, %49 : vector<8x32xf32>
      %cst_36 = arith.constant dense<0.000000e+00> : vector<8xf32>
      %56 = vector.multi_reduction <add>, %55, %cst_36 [1] : vector<8x32xf32> to vector<8xf32>
      %57 = vector.shape_cast %56 : vector<8xf32> to vector<8x1xf32>
      %58 = arith.mulf %54, %54 : vector<32x4xf32>
      %cst_37 = arith.constant dense<0.000000e+00> : vector<4xf32>
      %59 = vector.multi_reduction <add>, %58, %cst_37 [0] : vector<32x4xf32> to vector<4xf32>
      %60 = vector.shape_cast %59 : vector<4xf32> to vector<1x4xf32>
      %cst_38 = arith.constant dense<0.000000e+00> : vector<8x4xf32>
      %61 = tpu.matmul %49, %54, %cst_38 {dimension_numbers = #tpu.dot_dimension_numbers<[1], [0], [0], [1], [0, 0, 1, 1], [], []>} : vector<8x32xf32>, vector<32x4xf32>, vector<8x4xf32> -> vector<8x4xf32>
      %62 = vector.broadcast %57 : vector<8x1xf32> to vector<8x4xf32>
      %63 = vector.broadcast %60 : vector<1x4xf32> to vector<8x4xf32>
      %64 = arith.addf %62, %63 : vector<8x4xf32>
      %cst_39 = arith.constant 2.000000e+00 : f32
      %65 = vector.broadcast %cst_39 : f32 to vector<8x4xf32>
      %66 = arith.mulf %65, %61 : vector<8x4xf32>
      %67 = arith.subf %64, %66 : vector<8x4xf32>
      %cst_40 = arith.constant 0.000000e+00 : f32
      %68 = vector.broadcast %cst_40 : f32 to vector<8x4xf32>
      %69 = arith.maximumf %67, %68 : vector<8x4xf32>
      %cst_41 = arith.constant 1.000000e+00 : f32
      %70 = vector.broadcast %cst_41 : f32 to vector<8x4xf32>
      %71 = arith.mulf %69, %70 : vector<8x4xf32>
      %cst_42 = arith.constant 1.000000e+00 : f32
      %72 = vector.broadcast %cst_42 : f32 to vector<8x4xf32>
      %73 = arith.addf %72, %71 : vector<8x4xf32>
      %cst_43 = arith.constant 9.99999993E-9 : f32
      %74 = vector.broadcast %cst_43 : f32 to vector<8x4xf32>
      %75 = arith.addf %73, %74 : vector<8x4xf32>
      %76 = tpu.reciprocal %75 {approx = true} : vector<8x4xf32> -> vector<8x4xf32>
      %77 = arith.mulf %76, %76 : vector<8x4xf32>
      %cst_44 = arith.constant dense<0.000000e+00> : vector<8xf32>
      %78 = vector.multi_reduction <add>, %77, %cst_44 [1] : vector<8x4xf32> to vector<8xf32>
      %79 = vector.shape_cast %78 : vector<8xf32> to vector<8x1xf32>
      %80 = tpu.reciprocal %79 {approx = true} : vector<8x1xf32> -> vector<8x1xf32>
      %81 = vector.broadcast %80 : vector<8x1xf32> to vector<8x4xf32>
      %82 = arith.mulf %77, %81 : vector<8x4xf32>
      %c0_45 = arith.constant 0 : index
      %c0_46 = arith.constant 0 : index
      %83 = vector.load %arg11[%c0_45, %c0_46] : memref<8x32xf32, #tpu.memory_space<vmem>>, vector<8x32xf32>
      tpu.vector_store %arg11[%c0_45, %c0_46], %49 {strides = array<i32>} : memref<8x32xf32, #tpu.memory_space<vmem>>, vector<8x32xf32>,
      %c0_47 = arith.constant 0 : index
      %c0_48 = arith.constant 0 : index
      %84 = vector.load %arg12[%c0_47, %c0_48] : memref<8x4xf32, #tpu.memory_space<vmem>>, vector<8x4xf32>
      tpu.vector_store %arg12[%c0_47, %c0_48], %82 {strides = array<i32>} : memref<8x4xf32, #tpu.memory_space<vmem>>, vector<8x4xf32>,
    } else {
    }
    return
  }
  func.func @transform_0(%arg0: i32) -> (i32, i32) {
    %c0_i32 = arith.constant 0 : i32
    %c0_i32_0 = arith.constant 0 : i32
    %c0_i32_1 = arith.constant 0 : i32
    return %c0_i32, %c0_i32_0 : i32, i32
  }
  func.func @transform_1(%arg0: i32) -> (i32, i32) {
    %c0_i32 = arith.constant 0 : i32
    %c0_i32_0 = arith.constant 0 : i32
    %c0_i32_1 = arith.constant 0 : i32
    return %c0_i32, %c0_i32_0 : i32, i32
  }
  func.func @transform_2(%arg0: i32) -> (i32, i32) {
    %c0_i32 = arith.constant 0 : i32
    %c0_i32_0 = arith.constant 0 : i32
    %c0_i32_1 = arith.constant 0 : i32
    return %c0_i32, %c0_i32_0 : i32, i32
  }
  func.func @transform_3(%arg0: i32) -> (i32, i32) {
    %c0_i32 = arith.constant 0 : i32
    %c0_i32_0 = arith.constant 0 : i32
    %c0_i32_1 = arith.constant 0 : i32
    return %c0_i32, %c0_i32_0 : i32, i32
  }
  func.func @transform_4(%arg0: i32) -> (i32, i32) {
    %c0_i32 = arith.constant 0 : i32
    %c0_i32_0 = arith.constant 0 : i32
    %c0_i32_1 = arith.constant 0 : i32
    return %c0_i32, %c0_i32_0 : i32, i32
  }
  func.func @transform_5(%arg0: i32) -> (i32, i32, i32, i32) {
    %c0_i32 = arith.constant 0 : i32
    %c0_i32_0 = arith.constant 0 : i32
    %c0_i32_1 = arith.constant 0 : i32
    %c0_i32_2 = arith.constant 0 : i32
    return %arg0, %c0_i32, %c0_i32_0, %c0_i32_1 : i32, i32, i32, i32
  }
  func.func @transform_6(%arg0: i32) -> (i32, i32, i32) {
    %c0_i32 = arith.constant 0 : i32
    %c0_i32_0 = arith.constant 0 : i32
    %c0_i32_1 = arith.constant 0 : i32
    return %arg0, %c0_i32, %c0_i32_0 : i32, i32, i32
  }
  func.func @transform_7(%arg0: i32) -> (i32, i32, i32) {
    %c0_i32 = arith.constant 0 : i32
    %c0_i32_0 = arith.constant 0 : i32
    %c0_i32_1 = arith.constant 0 : i32
    return %arg0, %c0_i32, %c0_i32_0 : i32, i32, i32
  }
  func.func @transform_8(%arg0: i32) -> (i32, i32, i32) {
    %c0_i32 = arith.constant 0 : i32
    %c0_i32_0 = arith.constant 0 : i32
    %c0_i32_1 = arith.constant 0 : i32
    return %arg0, %c0_i32, %c0_i32_0 : i32, i32, i32
  }
  func.func @transform_9(%arg0: i32) -> (i32, i32, i32) {
    %c0_i32 = arith.constant 0 : i32
    %c0_i32_0 = arith.constant 0 : i32
    %c0_i32_1 = arith.constant 0 : i32
    return %arg0, %c0_i32, %c0_i32_0 : i32, i32, i32
  }
  func.func @transform_10(%arg0: i32) -> (i32, i32) {
    %c0_i32 = arith.constant 0 : i32
    %c0_i32_0 = arith.constant 0 : i32
    %c0_i32_1 = arith.constant 0 : i32
    return %c0_i32, %c0_i32_0 : i32, i32
  }
  func.func @transform_11(%arg0: i32) -> (i32, i32) {
    %c0_i32 = arith.constant 0 : i32
    %c0_i32_0 = arith.constant 0 : i32
    %c0_i32_1 = arith.constant 0 : i32
    return %c0_i32, %c0_i32_0 : i32, i32
  }
}

</mosaic_0001>

<llo_original>
// kernel: tpu_custom_call.1
$region0: #{tpu_custom_call.1}
  #allocation0 [shape = 'u32[]', space=smem, size = 0x4, offset = 0x4, fixed_abs, tag = 'smem constant byte address 0x4 - core index']
  #allocation1 [shape = 'u32[144,128]{1,0:T(1,128)}', space=vmem, size = 0x12000, scoped, tag = 'internal scratch']
  #allocation2 [shape = 'f32[8,32]{1,0:T(8,128)}', space=vmem, size = 0x1000, scoped, tag = 'scratch operand']
  #allocation3 [shape = 'f32[8,32]{1,0:T(8,128)}', space=vmem, size = 0x1000, scoped, tag = 'scratch operand']
  %s0 = inlined_call_operand.vmem [shape: f32[8,32], index: 0, kind: input, shape index: {}]
  %s1 = inlined_call_operand.vmem [shape: f32[8,16], index: 1, kind: input, shape index: {}]
  %s2 = inlined_call_operand.vmem [shape: f32[16,32], index: 2, kind: input, shape index: {}]
  %s3 = inlined_call_operand.vmem [shape: f32[1,32], index: 3, kind: input, shape index: {}]
  %s4 = inlined_call_operand.vmem [shape: f32[32,4], index: 4, kind: input, shape index: {}]
  %s5 = inlined_call_operand.vmem [shape: f32[3,16,32,8], index: 5, kind: input, shape index: {}]
  %s6 = inlined_call_operand.vmem [shape: f32[3,32,64], index: 6, kind: input, shape index: {}]
  %s7 = inlined_call_operand.vmem [shape: f32[3,1,64], index: 7, kind: input, shape index: {}]
  %s8 = inlined_call_operand.vmem [shape: f32[3,64,32], index: 8, kind: input, shape index: {}]
  %s9 = inlined_call_operand.vmem [shape: f32[3,1,32], index: 9, kind: input, shape index: {}]
  %s10 = inlined_call_operand.hbm [shape: f32[8,32], index: 10, kind: output, shape index: {0}]
  %s11 = inlined_call_operand.vmem [shape: f32[8,4], index: 11, kind: output, shape index: {1}]
  %12 = xla_tuple %s10, %s11
  %s13 = sld [smem:[#allocation0]]
  $region89: #{tpu_custom_call.1} parent=0
    _
  %s15 = ssub.s32 1, %s13
  %s16 = scalar_select 0, %s15, %s13
  $region1: #{tpu_custom_call.1} parent=0
    #allocation4 [shape = 'u8[4096]{0}', space=vmem, size = 0x1000, scoped, tag = 'output window, operand 0, single buffered']
    #allocation5 [shape = 's32[2]{0}', space=sflag, size = 0x8, scoped, tag = 'scoped memory for tpu_custom_call.1']
    %17 = vsyncpa [#allocation5], 0
    loop: start=0, step=1, limit=5
    $region2: #{tpu_custom_call.1} parent=1 // loop_pre_header
      _
    $region3: #{tpu_custom_call.1} parent=1 // loop_header
      %s19 = sphi 0, %s23
      %p20 = scmp.ge.s32.totalorder %s19, 5
      %s27 = sphi 0, %s27
      %s29 = sphi 0, %s27
      %s30 = sphi 0, %s29
      %s44 = sphi 0, %s30
      %s48 = sphi 0, %s48
      %s50 = sphi 0, %s48
      %s51 = sphi 0, %s50
      %s65 = sphi 0, %s51
      %s69 = sphi 0, %s69
      %s71 = sphi 0, %s69
      %s72 = sphi 0, %s71
      %s86 = sphi 0, %s72
      %s90 = sphi 0, %s90
      %s92 = sphi 0, %s90
      %s93 = sphi 0, %s92
      %s107 = sphi 0, %s93
      %s111 = sphi 0, %s111
      %s113 = sphi 0, %s111
      %s114 = sphi 0, %s113
      %s128 = sphi 0, %s114
      %s134 = sphi 0, %s136
      %s137 = sphi 0, %s134
      %s138 = sphi 0, %s137
      %s154 = sphi 0, %s138
      %s160 = sphi 0, %s162
      %s163 = sphi 0, %s160
      %s164 = sphi 0, %s163
      %s180 = sphi 0, %s164
      %s186 = sphi 0, %s188
      %s189 = sphi 0, %s186
      %s190 = sphi 0, %s189
      %s206 = sphi 0, %s190
      %s212 = sphi 0, %s214
      %s215 = sphi 0, %s212
      %s216 = sphi 0, %s215
      %s232 = sphi 0, %s216
      %s238 = sphi 0, %s240
      %s241 = sphi 0, %s238
      %s242 = sphi 0, %s241
      %s258 = sphi 0, %s242
      %s262 = sphi 0, %s262
      %s264 = sphi 0, %s262
      %s265 = sphi 0, %s264
      %s279 = sphi 0, %s265
      %s283 = sphi 0, %s283
      %s285 = sphi 0, %s283
      %s286 = sphi 0, %s285
      %s300 = sphi 0, %s286
    $region4: #{tpu_custom_call.1} parent=1 // loop_header_branch
      %22 = sbr.rel (%p20) target = $region8
    $region5: #{tpu_custom_call.1} parent=1 // loop_body
      %s24 = ssub.s32 %s19, 1
      %s25 = ssub.s32 %s19, 2
      %s26 = sadd.s32 %s19, 1
      %s28 = sadd.s32 %s27, 1
      %p31 = scmp.eq.s32.totalorder %s19, 2
      %p32 = scmp.ne.s32.totalorder %s27, %s29
      %p33 = scmp.eq.s32.totalorder %s19, 0
      %p34 = por %p32, %p33
      %p35 = scmp.ne.s32.totalorder %s27, %s29
      %p36 = scmp.eq.s32.totalorder %s24, 2
      %p37 = por %p35, %p36
      %p38 = scmp.ne.s32.totalorder %s29, %s30
      %p39 = scmp.eq.s32.totalorder %s24, 0
      %p40 = por %p38, %p39
      %p41 = scmp.ne.s32.totalorder %s29, %s30
      %p42 = scmp.eq.s32.totalorder %s25, 2
      %p43 = por %p41, %p42
      %p45 = scmp.ne.s32.totalorder %s30, %s44
      %p46 = scmp.eq.s32.totalorder %s25, 0
      %p47 = por %p45, %p46
      %s49 = sadd.s32 %s48, 1
      %p52 = scmp.eq.s32.totalorder %s19, 2
      %p53 = scmp.ne.s32.totalorder %s48, %s50
      %p54 = scmp.eq.s32.totalorder %s19, 0
      %p55 = por %p53, %p54
      %p56 = scmp.ne.s32.totalorder %s48, %s50
      %p57 = scmp.eq.s32.totalorder %s24, 2
      %p58 = por %p56, %p57
      %p59 = scmp.ne.s32.totalorder %s50, %s51
      %p60 = scmp.eq.s32.totalorder %s24, 0
      %p61 = por %p59, %p60
      %p62 = scmp.ne.s32.totalorder %s50, %s51
      %p63 = scmp.eq.s32.totalorder %s25, 2
      %p64 = por %p62, %p63
      %p66 = scmp.ne.s32.totalorder %s51, %s65
      %p67 = scmp.eq.s32.totalorder %s25, 0
      %p68 = por %p66, %p67
      %s70 = sadd.s32 %s69, 1
      %p73 = scmp.eq.s32.totalorder %s19, 2
      %p74 = scmp.ne.s32.totalorder %s69, %s71
      %p75 = scmp.eq.s32.totalorder %s19, 0
      %p76 = por %p74, %p75
      %p77 = scmp.ne.s32.totalorder %s69, %s71
      %p78 = scmp.eq.s32.totalorder %s24, 2
      %p79 = por %p77, %p78
      %p80 = scmp.ne.s32.totalorder %s71, %s72
      %p81 = scmp.eq.s32.totalorder %s24, 0
      %p82 = por %p80, %p81
      %p83 = scmp.ne.s32.totalorder %s71, %s72
      %p84 = scmp.eq.s32.totalorder %s25, 2
      %p85 = por %p83, %p84
      %p87 = scmp.ne.s32.totalorder %s72, %s86
      %p88 = scmp.eq.s32.totalorder %s25, 0
      %p89 = por %p87, %p88
      %s91 = sadd.s32 %s90, 1
      %p94 = scmp.eq.s32.totalorder %s19, 2
      %p95 = scmp.ne.s32.totalorder %s90, %s92
      %p96 = scmp.eq.s32.totalorder %s19, 0
      %p97 = por %p95, %p96
      %p98 = scmp.ne.s32.totalorder %s90, %s92
      %p99 = scmp.eq.s32.totalorder %s24, 2
      %p100 = por %p98, %p99
      %p101 = scmp.ne.s32.totalorder %s92, %s93
      %p102 = scmp.eq.s32.totalorder %s24, 0
      %p103 = por %p101, %p102
      %p104 = scmp.ne.s32.totalorder %s92, %s93
      %p105 = scmp.eq.s32.totalorder %s25, 2
      %p106 = por %p104, %p105
      %p108 = scmp.ne.s32.totalorder %s93, %s107
      %p109 = scmp.eq.s32.totalorder %s25, 0
      %p110 = por %p108, %p109
      %s112 = sadd.s32 %s111, 1
      %p115 = scmp.eq.s32.totalorder %s19, 2
      %p116 = scmp.ne.s32.totalorder %s111, %s113
      %p117 = scmp.eq.s32.totalorder %s19, 0
      %p118 = por %p116, %p117
      %p119 = scmp.ne.s32.totalorder %s111, %s113
      %p120 = scmp.eq.s32.totalorder %s24, 2
      %p121 = por %p119, %p120
      %p122 = scmp.ne.s32.totalorder %s113, %s114
      %p123 = scmp.eq.s32.totalorder %s24, 0
      %p124 = por %p122, %p123
      %p125 = scmp.ne.s32.totalorder %s113, %s114
      %p126 = scmp.eq.s32.totalorder %s25, 2
      %p127 = por %p125, %p126
      %p129 = scmp.ne.s32.totalorder %s114, %s128
      %p130 = scmp.eq.s32.totalorder %s25, 0
      %p131 = por %p129, %p130
      %s132 = ssub.s32 %s19, %s26
      %p133 = scmp.eq.s32.totalorder %s132, 0
      %s135 = sadd.s32 %s134, 1
      %s136 = scalar_select %p133, %s134, %s135
      %p139 = pneg %p133
      %p140 = scmp.eq.s32.totalorder %s19, 2
      %p141 = por %p139, %p140
      %p142 = scmp.ne.s32.totalorder %s134, %s137
      %p143 = scmp.eq.s32.totalorder %s19, 0
      %p144 = por %p142, %p143
      %p145 = scmp.ne.s32.totalorder %s134, %s137
      %p146 = scmp.eq.s32.totalorder %s24, 2
      %p147 = por %p145, %p146
      %p148 = scmp.ne.s32.totalorder %s137, %s138
      %p149 = scmp.eq.s32.totalorder %s24, 0
      %p150 = por %p148, %p149
      %p151 = scmp.ne.s32.totalorder %s137, %s138
      %p152 = scmp.eq.s32.totalorder %s25, 2
      %p153 = por %p151, %p152
      %p155 = scmp.ne.s32.totalorder %s138, %s154
      %p156 = scmp.eq.s32.totalorder %s25, 0
      %p157 = por %p155, %p156
      %s158 = ssub.s32 %s19, %s26
      %p159 = scmp.eq.s32.totalorder %s158, 0
      %s161 = sadd.s32 %s160, 1
      %s162 = scalar_select %p159, %s160, %s161
      %p165 = pneg %p159
      %p166 = scmp.eq.s32.totalorder %s19, 2
      %p167 = por %p165, %p166
      %p168 = scmp.ne.s32.totalorder %s160, %s163
      %p169 = scmp.eq.s32.totalorder %s19, 0
      %p170 = por %p168, %p169
      %p171 = scmp.ne.s32.totalorder %s160, %s163
      %p172 = scmp.eq.s32.totalorder %s24, 2
      %p173 = por %p171, %p172
      %p174 = scmp.ne.s32.totalorder %s163, %s164
      %p175 = scmp.eq.s32.totalorder %s24, 0
      %p176 = por %p174, %p175
      %p177 = scmp.ne.s32.totalorder %s163, %s164
      %p178 = scmp.eq.s32.totalorder %s25, 2
      %p179 = por %p177, %p178
      %p181 = scmp.ne.s32.totalorder %s164, %s180
      %p182 = scmp.eq.s32.totalorder %s25, 0
      %p183 = por %p181, %p182
      %s184 = ssub.s32 %s19, %s26
      %p185 = scmp.eq.s32.totalorder %s184, 0
      %s187 = sadd.s32 %s186, 1
      %s188 = scalar_select %p185, %s186, %s187
      %p191 = pneg %p185
      %p192 = scmp.eq.s32.totalorder %s19, 2
      %p193 = por %p191, %p192
      %p194 = scmp.ne.s32.totalorder %s186, %s189
      %p195 = scmp.eq.s32.totalorder %s19, 0
      %p196 = por %p194, %p195
      %p197 = scmp.ne.s32.totalorder %s186, %s189
      %p198 = scmp.eq.s32.totalorder %s24, 2
      %p199 = por %p197, %p198
      %p200 = scmp.ne.s32.totalorder %s189, %s190
      %p201 = scmp.eq.s32.totalorder %s24, 0
      %p202 = por %p200, %p201
      %p203 = scmp.ne.s32.totalorder %s189, %s190
      %p204 = scmp.eq.s32.totalorder %s25, 2
      %p205 = por %p203, %p204
      %p207 = scmp.ne.s32.totalorder %s190, %s206
      %p208 = scmp.eq.s32.totalorder %s25, 0
      %p209 = por %p207, %p208
      %s210 = ssub.s32 %s19, %s26
      %p211 = scmp.eq.s32.totalorder %s210, 0
      %s213 = sadd.s32 %s212, 1
      %s214 = scalar_select %p211, %s212, %s213
      %p217 = pneg %p211
      %p218 = scmp.eq.s32.totalorder %s19, 2
      %p219 = por %p217, %p218
      %p220 = scmp.ne.s32.totalorder %s212, %s215
      %p221 = scmp.eq.s32.totalorder %s19, 0
      %p222 = por %p220, %p221
      %p223 = scmp.ne.s32.totalorder %s212, %s215
      %p224 = scmp.eq.s32.totalorder %s24, 2
      %p225 = por %p223, %p224
      %p226 = scmp.ne.s32.totalorder %s215, %s216
      %p227 = scmp.eq.s32.totalorder %s24, 0
      %p228 = por %p226, %p227
      %p229 = scmp.ne.s32.totalorder %s215, %s216
      %p230 = scmp.eq.s32.totalorder %s25, 2
      %p231 = por %p229, %p230
      %p233 = scmp.ne.s32.totalorder %s216, %s232
      %p234 = scmp.eq.s32.totalorder %s25, 0
      %p235 = por %p233, %p234
      %s236 = ssub.s32 %s19, %s26
      %p237 = scmp.eq.s32.totalorder %s236, 0
      %s239 = sadd.s32 %s238, 1
      %s240 = scalar_select %p237, %s238, %s239
      %p243 = pneg %p237
      %p244 = scmp.eq.s32.totalorder %s19, 2
      %p245 = por %p243, %p244
      %p246 = scmp.ne.s32.totalorder %s238, %s241
      %p247 = scmp.eq.s32.totalorder %s19, 0
      %p248 = por %p246, %p247
      %p249 = scmp.ne.s32.totalorder %s238, %s241
      %p250 = scmp.eq.s32.totalorder %s24, 2
      %p251 = por %p249, %p250
      %p252 = scmp.ne.s32.totalorder %s241, %s242
      %p253 = scmp.eq.s32.totalorder %s24, 0
      %p254 = por %p252, %p253
      %p255 = scmp.ne.s32.totalorder %s241, %s242
      %p256 = scmp.eq.s32.totalorder %s25, 2
      %p257 = por %p255, %p256
      %p259 = scmp.ne.s32.totalorder %s242, %s258
      %p260 = scmp.eq.s32.totalorder %s25, 0
      %p261 = por %p259, %p260
      %s263 = sadd.s32 %s262, 1
      %p266 = scmp.eq.s32.totalorder %s19, 2
      %p267 = scmp.ne.s32.totalorder %s262, %s264
      %p268 = scmp.eq.s32.totalorder %s19, 0
      %p269 = por %p267, %p268
      %p270 = scmp.ne.s32.totalorder %s262, %s264
      %p271 = scmp.eq.s32.totalorder %s24, 2
      %p272 = por %p270, %p271
      %p273 = scmp.ne.s32.totalorder %s264, %s265
      %p274 = scmp.eq.s32.totalorder %s24, 0
      %p275 = por %p273, %p274
      %p276 = scmp.ne.s32.totalorder %s264, %s265
      %p277 = scmp.eq.s32.totalorder %s25, 2
      %p278 = por %p276, %p277
      %p280 = scmp.ne.s32.totalorder %s265, %s279
      %p281 = scmp.eq.s32.totalorder %s25, 0
      %p282 = por %p280, %p281
      %s284 = sadd.s32 %s283, 1
      %p287 = scmp.eq.s32.totalorder %s19, 2
      %p288 = scmp.ne.s32.totalorder %s283, %s285
      %p289 = scmp.eq.s32.totalorder %s19, 0
      %p290 = por %p288, %p289
      %p291 = scmp.ne.s32.totalorder %s283, %s285
      %p292 = scmp.eq.s32.totalorder %s24, 2
      %p293 = por %p291, %p292
      %p294 = scmp.ne.s32.totalorder %s285, %s286
      %p295 = scmp.eq.s32.totalorder %s24, 0
      %p296 = por %p294, %p295
      %p297 = scmp.ne.s32.totalorder %s285, %s286
      %p298 = scmp.eq.s32.totalorder %s25, 2
      %p299 = por %p297, %p298
      %p301 = scmp.ne.s32.totalorder %s286, %s300
      %p302 = scmp.eq.s32.totalorder %s25, 0
      %p303 = por %p301, %p302
      %p304 = scmp.le.s32.totalorder 1, %s19
      %p305 = scmp.lt.s32.totalorder %s19, 4
      %p306 = pnand %p304, %p305
      %p307 = pneg %p306
      // Predicated region
      $region9: #{tpu_custom_call.1} parent=5 // pred_check
        _
      $region10: #{tpu_custom_call.1} parent=5 // pred_check_branch
        %309 = sbr.rel (%p306) target = $region12
      $region11: #{tpu_custom_call.1} parent=5 // pred_region
        %s310 = ssub.s32 %s19, 1
        // Predicated region
        $region13: #{tpu_custom_call.1} parent=11 // pred_check
          %p311 = pneg %p40
        $region14: #{tpu_custom_call.1} parent=11 // pred_check_branch
          %313 = sbr.rel (%p311) target = $region16
        $region15: #{tpu_custom_call.1} parent=11 // pred_region
          _
        $region16: #{tpu_custom_call.1} parent=11 // pred_fallthru
          _
        // Predicated region
        $region17: #{tpu_custom_call.1} parent=11 // pred_check
          %p314 = pneg %p61
        $region18: #{tpu_custom_call.1} parent=11 // pred_check_branch
          %316 = sbr.rel (%p314) target = $region20
        $region19: #{tpu_custom_call.1} parent=11 // pred_region
          _
        $region20: #{tpu_custom_call.1} parent=11 // pred_fallthru
          _
        // Predicated region
        $region21: #{tpu_custom_call.1} parent=11 // pred_check
          %p317 = pneg %p82
        $region22: #{tpu_custom_call.1} parent=11 // pred_check_branch
          %319 = sbr.rel (%p317) target = $region24
        $region23: #{tpu_custom_call.1} parent=11 // pred_region
          _
        $region24: #{tpu_custom_call.1} parent=11 // pred_fallthru
          _
        // Predicated region
        $region25: #{tpu_custom_call.1} parent=11 // pred_check
          %p320 = pneg %p103
        $region26: #{tpu_custom_call.1} parent=11 // pred_check_branch
          %322 = sbr.rel (%p320) target = $region28
        $region27: #{tpu_custom_call.1} parent=11 // pred_region
          _
        $region28: #{tpu_custom_call.1} parent=11 // pred_fallthru
          _
        // Predicated region
        $region29: #{tpu_custom_call.1} parent=11 // pred_check
          %p323 = pneg %p124
        $region30: #{tpu_custom_call.1} parent=11 // pred_check_branch
          %325 = sbr.rel (%p323) target = $region32
        $region31: #{tpu_custom_call.1} parent=11 // pred_region
          _
        $region32: #{tpu_custom_call.1} parent=11 // pred_fallthru
          _
      $region12: #{tpu_custom_call.1} parent=5 // pred_fallthru
        _
      %p326 = scmp.lt.s32.totalorder %s19, 3
      // Predicated region
      $region33: #{tpu_custom_call.1} parent=5 // pred_check
        %p327 = pneg %p326
      $region34: #{tpu_custom_call.1} parent=5 // pred_check_branch
        %329 = sbr.rel (%p327) target = $region36
      $region35: #{tpu_custom_call.1} parent=5 // pred_region
        // Predicated region
        $region37: #{tpu_custom_call.1} parent=35 // pred_check
          %p330 = pneg %p144
        $region38: #{tpu_custom_call.1} parent=35 // pred_check_branch
          %332 = sbr.rel (%p330) target = $region40
        $region39: #{tpu_custom_call.1} parent=35 // pred_region
          %p333 = scmp.lt.s32.totalorder %s19, 2
          %s334 = scalar_select %p333, %s19, 2
          %s335 = smul.addr %s334, 64
          %s336 = smul.addr %s335, 8
          %s337 = scalar_lea.vmem %s5, %s336
        $region40: #{tpu_custom_call.1} parent=35 // pred_fallthru
          _
        // Predicated region
        $region41: #{tpu_custom_call.1} parent=35 // pred_check
          %p338 = pneg %p170
        $region42: #{tpu_custom_call.1} parent=35 // pred_check_branch
          %340 = sbr.rel (%p338) target = $region44
        $region43: #{tpu_custom_call.1} parent=35 // pred_region
          %p341 = scmp.lt.s32.totalorder %s19, 2
          %s342 = scalar_select %p341, %s19, 2
          %s343 = smul.addr %s342, 4
          %s344 = smul.addr %s343, 8
          %s345 = scalar_lea.vmem %s6, %s344
        $region44: #{tpu_custom_call.1} parent=35 // pred_fallthru
          _
        // Predicated region
        $region45: #{tpu_custom_call.1} parent=35 // pred_check
          %p346 = pneg %p196
        $region46: #{tpu_custom_call.1} parent=35 // pred_check_branch
          %348 = sbr.rel (%p346) target = $region48
        $region47: #{tpu_custom_call.1} parent=35 // pred_region
          %p349 = scmp.lt.s32.totalorder %s19, 2
          %s350 = scalar_select %p349, %s19, 2
          %s351 = scalar_lea.vmem %s7, %s350
        $region48: #{tpu_custom_call.1} parent=35 // pred_fallthru
          _
        // Predicated region
        $region49: #{tpu_custom_call.1} parent=35 // pred_check
          %p352 = pneg %p222
        $region50: #{tpu_custom_call.1} parent=35 // pred_check_branch
          %354 = sbr.rel (%p352) target = $region52
        $region51: #{tpu_custom_call.1} parent=35 // pred_region
          %p355 = scmp.lt.s32.totalorder %s19, 2
          %s356 = scalar_select %p355, %s19, 2
          %s357 = smul.addr %s356, 8
          %s358 = smul.addr %s357, 8
          %s359 = scalar_lea.vmem %s8, %s358
        $region52: #{tpu_custom_call.1} parent=35 // pred_fallthru
          _
        // Predicated region
        $region53: #{tpu_custom_call.1} parent=35 // pred_check
          %p360 = pneg %p248
        $region54: #{tpu_custom_call.1} parent=35 // pred_check_branch
          %362 = sbr.rel (%p360) target = $region56
        $region55: #{tpu_custom_call.1} parent=35 // pred_region
          %p363 = scmp.lt.s32.totalorder %s19, 2
          %s364 = scalar_select %p363, %s19, 2
          %s365 = scalar_lea.vmem %s9, %s364
        $region56: #{tpu_custom_call.1} parent=35 // pred_fallthru
          _
      $region36: #{tpu_custom_call.1} parent=5 // pred_fallthru
        _
      %p366 = scmp.le.s32.totalorder 1, %s19
      %p367 = scmp.lt.s32.totalorder %s19, 4
      %p368 = pnand %p366, %p367
      %p369 = pneg %p368
      // Predicated region
      $region57: #{tpu_custom_call.1} parent=5 // pred_check
        _
      $region58: #{tpu_custom_call.1} parent=5 // pred_check_branch
        %371 = sbr.rel (%p368) target = $region60
      $region59: #{tpu_custom_call.1} parent=5 // pred_region
        %s372 = ssub.s32 %s19, 1
        %p373 = pneg %p40
        %p374 = pneg %p37
        %p375 = pneg %p61
        %p376 = pneg %p58
        %p377 = pneg %p82
        %p378 = pneg %p79
        %p379 = pneg %p103
        %p380 = pneg %p100
        %p381 = pneg %p124
        %p382 = pneg %p121
        %p383 = scmp.lt.s32.totalorder %s24, 2
        %s384 = scalar_select %p383, %s24, 2
        %s385 = smul.addr %s384, 64
        %s386 = smul.addr %s385, 8
        %s387 = scalar_lea.vmem %s5, %s386
        %p388 = pneg %p150
        %p389 = pneg %p147
        %p390 = scmp.lt.s32.totalorder %s24, 2
        %s391 = scalar_select %p390, %s24, 2
        %s392 = smul.addr %s391, 4
        %s393 = smul.addr %s392, 8
        %s394 = scalar_lea.vmem %s6, %s393
        %p395 = pneg %p176
        %p396 = pneg %p173
        %p397 = scmp.lt.s32.totalorder %s24, 2
        %s398 = scalar_select %p397, %s24, 2
        %s399 = scalar_lea.vmem %s7, %s398
        %p400 = pneg %p202
        %p401 = pneg %p199
        %p402 = scmp.lt.s32.totalorder %s24, 2
        %s403 = scalar_select %p402, %s24, 2
        %s404 = smul.addr %s403, 8
        %s405 = smul.addr %s404, 8
        %s406 = scalar_lea.vmem %s8, %s405
        %p407 = pneg %p228
        %p408 = pneg %p225
        %p409 = scmp.lt.s32.totalorder %s24, 2
        %s410 = scalar_select %p409, %s24, 2
        %s411 = scalar_lea.vmem %s9, %s410
        %p412 = pneg %p254
        %p413 = pneg %p251
        %p414 = pneg %p275
        %p415 = pneg %p272
        %p416 = pneg %p296
        %p417 = pneg %p293
        %p418 = scmp.lt.s32.totalorder %s24, 2
        %s419 = scalar_select %p418, %s24, 2
        %s420 = smul.addr %s419, 64
        %s421 = smul.addr %s420, 8
        %s422 = scalar_lea.vmem %s5, %s421
        %p423 = scmp.lt.s32.totalorder %s24, 2
        %s424 = scalar_select %p423, %s24, 2
        %s425 = smul.addr %s424, 4
        %s426 = smul.addr %s425, 8
        %s427 = scalar_lea.vmem %s6, %s426
        %p428 = scmp.lt.s32.totalorder %s24, 2
        %s429 = scalar_select %p428, %s24, 2
        %s430 = scalar_lea.vmem %s7, %s429
        %p431 = scmp.lt.s32.totalorder %s24, 2
        %s432 = scalar_select %p431, %s24, 2
        %s433 = smul.addr %s432, 8
        %s434 = smul.addr %s433, 8
        %s435 = scalar_lea.vmem %s8, %s434
        %p436 = scmp.lt.s32.totalorder %s24, 2
        %s437 = scalar_select %p436, %s24, 2
        %s438 = scalar_lea.vmem %s9, %s437
        %p439 = scmp.eq.s32.totalorder %s24, 0
        // Predicated region
        $region61: #{tpu_custom_call.1} parent=59 // pred_check
          %p440 = pneg %p439
        $region62: #{tpu_custom_call.1} parent=59 // pred_check_branch
          %442 = sbr.rel (%p440) target = $region64
        $region63: #{tpu_custom_call.1} parent=59 // pred_region
          %v443 = vld [vmem:[%s0] sm:$0xff]
          %vm444 = vcmask 261120
          %445 = vst.msk [vmem:[#allocation2] sm:$0xff] %vm444, %v443
          %v446 = vld [vmem:[%s1] sm:$0xff]
          %v447 = vld [vmem:[%s2] sm:$0xff]
          %v448 = vld [vmem:[%s2 + $0x8] sm:$0xff]
          %v449 = vld [vmem:[%s3] sm:$0x1]
          %v451 = vlaneseq
          %v452 = vshrl.u32 %v451, 7
          %v453 = vsub.s32 0, %v452
          %v454 = vrot.slane %v449, %v453
          %vm456 = vcmask 130048
          %v458 = vsel %vm456, %v446, 0
          %460 = vmatprep.subr.mxu0 0.0
          %461 = vmatpush1.msra.mxu0 %v447
          %462 = vmatprep.subr.mxu0 0.0
          %463 = vmatpush1.msra.mxu0 %v448
          %464 = vmatprep.subr.mxu0 0.0
          %465 = vmatpush1.msra.mxu0 0.0
          %466 = vmatprep.subr.mxu0 0.0
          %467 = vmatpush1.msra.mxu0 0.0
          %468 = vmatprep.subr.mxu0 0.0
          %469 = vmatpush1.msra.mxu0 0.0
          %470 = vmatprep.subr.mxu0 0.0
          %471 = vmatpush1.msra.mxu0 0.0
          %472 = vmatprep.subr.mxu0 0.0
          %473 = vmatpush1.msra.mxu0 0.0
          %474 = vmatprep.subr.mxu0 0.0
          %475 = vmatpush1.msra.mxu0 0.0
          %476 = vmatprep.subr.mxu0 0.0
          %477 = vmatpush1.msra.mxu0 0.0
          %478 = vmatprep.subr.mxu0 0.0
          %479 = vmatpush1.msra.mxu0 0.0
          %480 = vmatprep.subr.mxu0 0.0
          %481 = vmatpush1.msra.mxu0 0.0
          %482 = vmatprep.subr.mxu0 0.0
          %483 = vmatpush1.msra.mxu0 0.0
          %484 = vmatprep.subr.mxu0 0.0
          %485 = vmatpush1.msra.mxu0 0.0
          %486 = vmatprep.subr.mxu0 0.0
          %487 = vmatpush1.msra.mxu0 0.0
          %488 = vmatprep.subr.mxu0 0.0
          %489 = vmatpush1.msra.mxu0 0.0
          %490 = vmatprep.subr.mxu0 0.0
          %491 = vmatpush1.msra.mxu0 0.0
          %492 = vmatprep.subr.mxu0 0.0
          %493 = vmatpush1.msra.mxu0 0.0
          %494 = vmatprep.subr.mxu0 0.0
          %495 = vmatpush1.msra.mxu0 0.0
          %496 = vmatprep.subr.mxu0 0.0
          %497 = vmatpush1.msra.mxu0 0.0
          %498 = vmatprep.subr.mxu0 0.0
          %499 = vmatpush1.msra.mxu0 0.0
          %500 = vmatprep.subr.mxu0 0.0
          %501 = vmatpush1.msra.mxu0 0.0
          %502 = vmatprep.subr.mxu0 0.0
          %503 = vmatpush1.msra.mxu0 0.0
          %504 = vmatprep.subr.mxu0 0.0
          %505 = vmatpush1.msra.mxu0 0.0
          %506 = vmatprep.subr.mxu0 0.0
          %507 = vmatpush1.msra.mxu0 0.0
          %508 = vmatprep.subr.mxu0 0.0
          %509 = vmatpush1.msra.mxu0 0.0
          %510 = vmatprep.subr.mxu0 0.0
          %511 = vmatpush1.msra.mxu0 0.0
          %512 = vmatprep.subr.mxu0 0.0
          %513 = vmatpush1.msra.mxu0 0.0
          %514 = vmatprep.subr.mxu0 0.0
          %515 = vmatpush1.msra.mxu0 0.0
          %516 = vmatprep.subr.mxu0 0.0
          %517 = vmatpush1.msra.mxu0 0.0
          %518 = vmatprep.subr.mxu0 0.0
          %519 = vmatpush1.msra.mxu0 0.0
          %520 = vmatprep.subr.mxu0 0.0
          %521 = vmatpush1.msra.mxu0 0.0
          %522 = vmatprep.subr.mxu0 0.0
          %523 = vmatpush1.msra.mxu0 0.0
          %524 = vmatprep.mubr.f32.mxu0 0.0
          %525 = vmatmul.mubr.f32.gmra.mrb[0].mxu0 %v458
          %v526 = vpop.f32.mrb[0].mxu0
          %v527 = vadd.f32 %v454, %v526
          %v528 = vpop.f32.mrb[0].mxu0
          %529 = vdwg.mxu0
          %530 = vst.msk [vmem:[#allocation3] sm:$0xff] %vm444, %v527
        $region64: #{tpu_custom_call.1} parent=59 // pred_fallthru
          _
        %v531 = vld [vmem:[#allocation2] sm:$0xff]
        %v532 = vld [vmem:[#allocation3] sm:$0xff]
        %v533 = vld [vmem:[%s422] sm:$0xff]
        %v534 = vld [vmem:[%s422 + $0x8] sm:$0xff]
        %v535 = vld [vmem:[%s422 + $0x10] sm:$0xff]
        %v536 = vld [vmem:[%s422 + $0x18] sm:$0xff]
        %v537 = vld [vmem:[%s422 + $0x20] sm:$0xff]
        %v538 = vld [vmem:[%s422 + $0x28] sm:$0xff]
        %v539 = vld [vmem:[%s422 + $0x30] sm:$0xff]
        %v540 = vld [vmem:[%s422 + $0x38] sm:$0xff]
        %v541 = vld [vmem:[%s422 + $0x40] sm:$0xff]
        %v542 = vld [vmem:[%s422 + $0x48] sm:$0xff]
        %v543 = vld [vmem:[%s422 + $0x50] sm:$0xff]
        %v544 = vld [vmem:[%s422 + $0x58] sm:$0xff]
        %v545 = vld [vmem:[%s422 + $0x60] sm:$0xff]
        %v546 = vld [vmem:[%s422 + $0x68] sm:$0xff]
        %v547 = vld [vmem:[%s422 + $0x70] sm:$0xff]
        %v548 = vld [vmem:[%s422 + $0x78] sm:$0xff]
        %v549 = vld [vmem:[%s422 + $0x80] sm:$0xff]
        %v550 = vld [vmem:[%s422 + $0x88] sm:$0xff]
        %v551 = vld [vmem:[%s422 + $0x90] sm:$0xff]
        %v552 = vld [vmem:[%s422 + $0x98] sm:$0xff]
        %v553 = vld [vmem:[%s422 + $0xa0] sm:$0xff]
        %v554 = vld [vmem:[%s422 + $0xa8] sm:$0xff]
        %v555 = vld [vmem:[%s422 + $0xb0] sm:$0xff]
        %v556 = vld [vmem:[%s422 + $0xb8] sm:$0xff]
        %v557 = vld [vmem:[%s422 + $0xc0] sm:$0xff]
        %v558 = vld [vmem:[%s422 + $0xc8] sm:$0xff]
        %v559 = vld [vmem:[%s422 + $0xd0] sm:$0xff]
        %v560 = vld [vmem:[%s422 + $0xd8] sm:$0xff]
        %v561 = vld [vmem:[%s422 + $0xe0] sm:$0xff]
        %v562 = vld [vmem:[%s422 + $0xe8] sm:$0xff]
        %v563 = vld [vmem:[%s422 + $0xf0] sm:$0xff]
        %v564 = vld [vmem:[%s422 + $0xf8] sm:$0xff]
        %v565 = vld [vmem:[%s422 + $0x100] sm:$0xff]
        %v566 = vld [vmem:[%s422 + $0x108] sm:$0xff]
        %v567 = vld [vmem:[%s422 + $0x110] sm:$0xff]
        %v568 = vld [vmem:[%s422 + $0x118] sm:$0xff]
        %v569 = vld [vmem:[%s422 + $0x120] sm:$0xff]
        %v570 = vld [vmem:[%s422 + $0x128] sm:$0xff]
        %v571 = vld [vmem:[%s422 + $0x130] sm:$0xff]
        %v572 = vld [vmem:[%s422 + $0x138] sm:$0xff]
        %v573 = vld [vmem:[%s422 + $0x140] sm:$0xff]
        %v574 = vld [vmem:[%s422 + $0x148] sm:$0xff]
        %v575 = vld [vmem:[%s422 + $0x150] sm:$0xff]
        %v576 = vld [vmem:[%s422 + $0x158] sm:$0xff]
        %v577 = vld [vmem:[%s422 + $0x160] sm:$0xff]
        %v578 = vld [vmem:[%s422 + $0x168] sm:$0xff]
        %v579 = vld [vmem:[%s422 + $0x170] sm:$0xff]
        %v580 = vld [vmem:[%s422 + $0x178] sm:$0xff]
        %v581 = vld [vmem:[%s422 + $0x180] sm:$0xff]
        %v582 = vld [vmem:[%s422 + $0x188] sm:$0xff]
        %v583 = vld [vmem:[%s422 + $0x190] sm:$0xff]
        %v584 = vld [vmem:[%s422 + $0x198] sm:$0xff]
        %v585 = vld [vmem:[%s422 + $0x1a0] sm:$0xff]
        %v586 = vld [vmem:[%s422 + $0x1a8] sm:$0xff]
        %v587 = vld [vmem:[%s422 + $0x1b0] sm:$0xff]
        %v588 = vld [vmem:[%s422 + $0x1b8] sm:$0xff]
        %v589 = vld [vmem:[%s422 + $0x1c0] sm:$0xff]
        %v590 = vld [vmem:[%s422 + $0x1c8] sm:$0xff]
        %v591 = vld [vmem:[%s422 + $0x1d0] sm:$0xff]
        %v592 = vld [vmem:[%s422 + $0x1d8] sm:$0xff]
        %v593 = vld [vmem:[%s422 + $0x1e0] sm:$0xff]
        %v594 = vld [vmem:[%s422 + $0x1e8] sm:$0xff]
        %v595 = vld [vmem:[%s422 + $0x1f0] sm:$0xff]
        %v596 = vld [vmem:[%s422 + $0x1f8] sm:$0xff]
        %vm597 = vcmask 261120
        %v599 = vsel %vm597, %v531, 0
        %601 = vmatprep.subr.mxu0 0.0
        %602 = vmatpush1.msra.mxu0 %v533
        %603 = vmatprep.subr.mxu0 0.0
        %604 = vmatpush1.msra.mxu0 %v534
        %605 = vmatprep.subr.mxu0 0.0
        %606 = vmatpush1.msra.mxu0 %v535
        %607 = vmatprep.subr.mxu0 0.0
        %608 = vmatpush1.msra.mxu0 %v536
        %609 = vmatprep.subr.mxu0 0.0
        %610 = vmatpush1.msra.mxu0 0.0
        %611 = vmatprep.subr.mxu0 0.0
        %612 = vmatpush1.msra.mxu0 0.0
        %613 = vmatprep.subr.mxu0 0.0
        %614 = vmatpush1.msra.mxu0 0.0
        %615 = vmatprep.subr.mxu0 0.0
        %616 = vmatpush1.msra.mxu0 0.0
        %617 = vmatprep.subr.mxu0 0.0
        %618 = vmatpush1.msra.mxu0 0.0
        %619 = vmatprep.subr.mxu0 0.0
        %620 = vmatpush1.msra.mxu0 0.0
        %621 = vmatprep.subr.mxu0 0.0
        %622 = vmatpush1.msra.mxu0 0.0
        %623 = vmatprep.subr.mxu0 0.0
        %624 = vmatpush1.msra.mxu0 0.0
        %625 = vmatprep.subr.mxu0 0.0
        %626 = vmatpush1.msra.mxu0 0.0
        %627 = vmatprep.subr.mxu0 0.0
        %628 = vmatpush1.msra.mxu0 0.0
        %629 = vmatprep.subr.mxu0 0.0
        %630 = vmatpush1.msra.mxu0 0.0
        %631 = vmatprep.subr.mxu0 0.0
        %632 = vmatpush1.msra.mxu0 0.0
        %633 = vmatprep.subr.mxu0 0.0
        %634 = vmatpush1.msra.mxu0 0.0
        %635 = vmatprep.subr.mxu0 0.0
        %636 = vmatpush1.msra.mxu0 0.0
        %637 = vmatprep.subr.mxu0 0.0
        %638 = vmatpush1.msra.mxu0 0.0
        %639 = vmatprep.subr.mxu0 0.0
        %640 = vmatpush1.msra.mxu0 0.0
        %641 = vmatprep.subr.mxu0 0.0
        %642 = vmatpush1.msra.mxu0 0.0
        %643 = vmatprep.subr.mxu0 0.0
        %644 = vmatpush1.msra.mxu0 0.0
        %645 = vmatprep.subr.mxu0 0.0
        %646 = vmatpush1.msra.mxu0 0.0
        %647 = vmatprep.subr.mxu0 0.0
        %648 = vmatpush1.msra.mxu0 0.0
        %649 = vmatprep.subr.mxu0 0.0
        %650 = vmatpush1.msra.mxu0 0.0
        %651 = vmatprep.subr.mxu0 0.0
        %652 = vmatpush1.msra.mxu0 0.0
        %653 = vmatprep.subr.mxu0 0.0
        %654 = vmatpush1.msra.mxu0 0.0
        %655 = vmatprep.subr.mxu0 0.0
        %656 = vmatpush1.msra.mxu0 0.0
        %657 = vmatprep.subr.mxu0 0.0
        %658 = vmatpush1.msra.mxu0 0.0
        %659 = vmatprep.subr.mxu0 0.0
        %660 = vmatpush1.msra.mxu0 0.0
        %661 = vmatprep.subr.mxu0 0.0
        %662 = vmatpush1.msra.mxu0 0.0
        %663 = vmatprep.subr.mxu0 0.0
        %664 = vmatpush1.msra.mxu0 0.0
        %665 = vmatprep.mubr.f32.mxu0 0.0
        %666 = vmatmul.mubr.f32.gmra.mrb[0].mxu0 %v599
        %v667 = vpop.f32.mrb[0].mxu0
        %v668 = vadd.f32 0.0, %v667
        %v669 = vpop.f32.mrb[0].mxu0
        %670 = vdwg.mxu0
        %671 = vmatprep.subr.mxu0 0.0
        %672 = vmatpush1.msra.mxu0 %v537
        %673 = vmatprep.subr.mxu0 0.0
        %674 = vmatpush1.msra.mxu0 %v538
        %675 = vmatprep.subr.mxu0 0.0
        %676 = vmatpush1.msra.mxu0 %v539
        %677 = vmatprep.subr.mxu0 0.0
        %678 = vmatpush1.msra.mxu0 %v540
        %679 = vmatprep.subr.mxu0 0.0
        %680 = vmatpush1.msra.mxu0 0.0
        %681 = vmatprep.subr.mxu0 0.0
        %682 = vmatpush1.msra.mxu0 0.0
        %683 = vmatprep.subr.mxu0 0.0
        %684 = vmatpush1.msra.mxu0 0.0
        %685 = vmatprep.subr.mxu0 0.0
        %686 = vmatpush1.msra.mxu0 0.0
        %687 = vmatprep.subr.mxu0 0.0
        %688 = vmatpush1.msra.mxu0 0.0
        %689 = vmatprep.subr.mxu0 0.0
        %690 = vmatpush1.msra.mxu0 0.0
        %691 = vmatprep.subr.mxu0 0.0
        %692 = vmatpush1.msra.mxu0 0.0
        %693 = vmatprep.subr.mxu0 0.0
        %694 = vmatpush1.msra.mxu0 0.0
        %695 = vmatprep.subr.mxu0 0.0
        %696 = vmatpush1.msra.mxu0 0.0
        %697 = vmatprep.subr.mxu0 0.0
        %698 = vmatpush1.msra.mxu0 0.0
        %699 = vmatprep.subr.mxu0 0.0
        %700 = vmatpush1.msra.mxu0 0.0
        %701 = vmatprep.subr.mxu0 0.0
        %702 = vmatpush1.msra.mxu0 0.0
        %703 = vmatprep.subr.mxu0 0.0
        %704 = vmatpush1.msra.mxu0 0.0
        %705 = vmatprep.subr.mxu0 0.0
        %706 = vmatpush1.msra.mxu0 0.0
        %707 = vmatprep.subr.mxu0 0.0
        %708 = vmatpush1.msra.mxu0 0.0
        %709 = vmatprep.subr.mxu0 0.0
        %710 = vmatpush1.msra.mxu0 0.0
        %711 = vmatprep.subr.mxu0 0.0
        %712 = vmatpush1.msra.mxu0 0.0
        %713 = vmatprep.subr.mxu0 0.0
        %714 = vmatpush1.msra.mxu0 0.0
        %715 = vmatprep.subr.mxu0 0.0
        %716 = vmatpush1.msra.mxu0 0.0
        %717 = vmatprep.subr.mxu0 0.0
        %718 = vmatpush1.msra.mxu0 0.0
        %719 = vmatprep.subr.mxu0 0.0
        %720 = vmatpush1.msra.mxu0 0.0
        %721 = vmatprep.subr.mxu0 0.0
        %722 = vmatpush1.msra.mxu0 0.0
        %723 = vmatprep.subr.mxu0 0.0
        %724 = vmatpush1.msra.mxu0 0.0
        %725 = vmatprep.subr.mxu0 0.0
        %726 = vmatpush1.msra.mxu0 0.0
        %727 = vmatprep.subr.mxu0 0.0
        %728 = vmatpush1.msra.mxu0 0.0
        %729 = vmatprep.subr.mxu0 0.0
        %730 = vmatpush1.msra.mxu0 0.0
        %731 = vmatprep.subr.mxu0 0.0
        %732 = vmatpush1.msra.mxu0 0.0
        %733 = vmatprep.subr.mxu0 0.0
        %734 = vmatpush1.msra.mxu0 0.0
        %735 = vmatprep.mubr.f32.mxu0 0.0
        %736 = vmatmul.mubr.f32.gmra.mrb[0].mxu0 %v599
        %v737 = vpop.f32.mrb[0].mxu0
        %v738 = vadd.f32 0.0, %v737
        %v739 = vpop.f32.mrb[0].mxu0
        %740 = vdwg.mxu0
        %741 = vmatprep.subr.mxu0 0.0
        %742 = vmatpush1.msra.mxu0 %v541
        %743 = vmatprep.subr.mxu0 0.0
        %744 = vmatpush1.msra.mxu0 %v542
        %745 = vmatprep.subr.mxu0 0.0
        %746 = vmatpush1.msra.mxu0 %v543
        %747 = vmatprep.subr.mxu0 0.0
        %748 = vmatpush1.msra.mxu0 %v544
        %749 = vmatprep.subr.mxu0 0.0
        %750 = vmatpush1.msra.mxu0 0.0
        %751 = vmatprep.subr.mxu0 0.0
        %752 = vmatpush1.msra.mxu0 0.0
        %753 = vmatprep.subr.mxu0 0.0
        %754 = vmatpush1.msra.mxu0 0.0
        %755 = vmatprep.subr.mxu0 0.0
        %756 = vmatpush1.msra.mxu0 0.0
        %757 = vmatprep.subr.mxu0 0.0
        %758 = vmatpush1.msra.mxu0 0.0
        %759 = vmatprep.subr.mxu0 0.0
        %760 = vmatpush1.msra.mxu0 0.0
        %761 = vmatprep.subr.mxu0 0.0
        %762 = vmatpush1.msra.mxu0 0.0
        %763 = vmatprep.subr.mxu0 0.0
        %764 = vmatpush1.msra.mxu0 0.0
        %765 = vmatprep.subr.mxu0 0.0
        %766 = vmatpush1.msra.mxu0 0.0
        %767 = vmatprep.subr.mxu0 0.0
        %768 = vmatpush1.msra.mxu0 0.0
        %769 = vmatprep.subr.mxu0 0.0
        %770 = vmatpush1.msra.mxu0 0.0
        %771 = vmatprep.subr.mxu0 0.0
        %772 = vmatpush1.msra.mxu0 0.0
        %773 = vmatprep.subr.mxu0 0.0
        %774 = vmatpush1.msra.mxu0 0.0
        %775 = vmatprep.subr.mxu0 0.0
        %776 = vmatpush1.msra.mxu0 0.0
        %777 = vmatprep.subr.mxu0 0.0
        %778 = vmatpush1.msra.mxu0 0.0
        %779 = vmatprep.subr.mxu0 0.0
        %780 = vmatpush1.msra.mxu0 0.0
        %781 = vmatprep.subr.mxu0 0.0
        %782 = vmatpush1.msra.mxu0 0.0
        %783 = vmatprep.subr.mxu0 0.0
        %784 = vmatpush1.msra.mxu0 0.0
        %785 = vmatprep.subr.mxu0 0.0
        %786 = vmatpush1.msra.mxu0 0.0
        %787 = vmatprep.subr.mxu0 0.0
        %788 = vmatpush1.msra.mxu0 0.0
        %789 = vmatprep.subr.mxu0 0.0
        %790 = vmatpush1.msra.mxu0 0.0
        %791 = vmatprep.subr.mxu0 0.0
        %792 = vmatpush1.msra.mxu0 0.0
        %793 = vmatprep.subr.mxu0 0.0
        %794 = vmatpush1.msra.mxu0 0.0
        %795 = vmatprep.subr.mxu0 0.0
        %796 = vmatpush1.msra.mxu0 0.0
        %797 = vmatprep.subr.mxu0 0.0
        %798 = vmatpush1.msra.mxu0 0.0
        %799 = vmatprep.subr.mxu0 0.0
        %800 = vmatpush1.msra.mxu0 0.0
        %801 = vmatprep.subr.mxu0 0.0
        %802 = vmatpush1.msra.mxu0 0.0
        %803 = vmatprep.subr.mxu0 0.0
        %804 = vmatpush1.msra.mxu0 0.0
        %805 = vmatprep.mubr.f32.mxu0 0.0
        %806 = vmatmul.mubr.f32.gmra.mrb[0].mxu0 %v599
        %v807 = vpop.f32.mrb[0].mxu0
        %v808 = vadd.f32 0.0, %v807
        %v809 = vpop.f32.mrb[0].mxu0
        %810 = vdwg.mxu0
        %811 = vmatprep.subr.mxu0 0.0
        %812 = vmatpush1.msra.mxu0 %v545
        %813 = vmatprep.subr.mxu0 0.0
        %814 = vmatpush1.msra.mxu0 %v546
        %815 = vmatprep.subr.mxu0 0.0
        %816 = vmatpush1.msra.mxu0 %v547
        %817 = vmatprep.subr.mxu0 0.0
        %818 = vmatpush1.msra.mxu0 %v548
        %819 = vmatprep.subr.mxu0 0.0
        %820 = vmatpush1.msra.mxu0 0.0
        %821 = vmatprep.subr.mxu0 0.0
        %822 = vmatpush1.msra.mxu0 0.0
        %823 = vmatprep.subr.mxu0 0.0
        %824 = vmatpush1.msra.mxu0 0.0
        %825 = vmatprep.subr.mxu0 0.0
        %826 = vmatpush1.msra.mxu0 0.0
        %827 = vmatprep.subr.mxu0 0.0
        %828 = vmatpush1.msra.mxu0 0.0
        %829 = vmatprep.subr.mxu0 0.0
        %830 = vmatpush1.msra.mxu0 0.0
        %831 = vmatprep.subr.mxu0 0.0
        %832 = vmatpush1.msra.mxu0 0.0
        %833 = vmatprep.subr.mxu0 0.0
        %834 = vmatpush1.msra.mxu0 0.0
        %835 = vmatprep.subr.mxu0 0.0
        %836 = vmatpush1.msra.mxu0 0.0
        %837 = vmatprep.subr.mxu0 0.0
        %838 = vmatpush1.msra.mxu0 0.0
        %839 = vmatprep.subr.mxu0 0.0
        %840 = vmatpush1.msra.mxu0 0.0
        %841 = vmatprep.subr.mxu0 0.0
        %842 = vmatpush1.msra.mxu0 0.0
        %843 = vmatprep.subr.mxu0 0.0
        %844 = vmatpush1.msra.mxu0 0.0
        %845 = vmatprep.subr.mxu0 0.0
        %846 = vmatpush1.msra.mxu0 0.0
        %847 = vmatprep.subr.mxu0 0.0
        %848 = vmatpush1.msra.mxu0 0.0
        %849 = vmatprep.subr.mxu0 0.0
        %850 = vmatpush1.msra.mxu0 0.0
        %851 = vmatprep.subr.mxu0 0.0
        %852 = vmatpush1.msra.mxu0 0.0
        %853 = vmatprep.subr.mxu0 0.0
        %854 = vmatpush1.msra.mxu0 0.0
        %855 = vmatprep.subr.mxu0 0.0
        %856 = vmatpush1.msra.mxu0 0.0
        %857 = vmatprep.subr.mxu0 0.0
        %858 = vmatpush1.msra.mxu0 0.0
        %859 = vmatprep.subr.mxu0 0.0
        %860 = vmatpush1.msra.mxu0 0.0
        %861 = vmatprep.subr.mxu0 0.0
        %862 = vmatpush1.msra.mxu0 0.0
        %863 = vmatprep.subr.mxu0 0.0
        %864 = vmatpush1.msra.mxu0 0.0
        %865 = vmatprep.subr.mxu0 0.0
        %866 = vmatpush1.msra.mxu0 0.0
        %867 = vmatprep.subr.mxu0 0.0
        %868 = vmatpush1.msra.mxu0 0.0
        %869 = vmatprep.subr.mxu0 0.0
        %870 = vmatpush1.msra.mxu0 0.0
        %871 = vmatprep.subr.mxu0 0.0
        %872 = vmatpush1.msra.mxu0 0.0
        %873 = vmatprep.subr.mxu0 0.0
        %874 = vmatpush1.msra.mxu0 0.0
        %875 = vmatprep.mubr.f32.mxu0 0.0
        %876 = vmatmul.mubr.f32.gmra.mrb[0].mxu0 %v599
        %v877 = vpop.f32.mrb[0].mxu0
        %v878 = vadd.f32 0.0, %v877
        %v879 = vpop.f32.mrb[0].mxu0
        %880 = vdwg.mxu0
        %v882 = vsel %vm597, %v532, 0
        %884 = vmatprep.subr.mxu0 0.0
        %885 = vmatpush1.msra.mxu0 %v549
        %886 = vmatprep.subr.mxu0 0.0
        %887 = vmatpush1.msra.mxu0 %v550
        %888 = vmatprep.subr.mxu0 0.0
        %889 = vmatpush1.msra.mxu0 %v551
        %890 = vmatprep.subr.mxu0 0.0
        %891 = vmatpush1.msra.mxu0 %v552
        %892 = vmatprep.subr.mxu0 0.0
        %893 = vmatpush1.msra.mxu0 0.0
        %894 = vmatprep.subr.mxu0 0.0
        %895 = vmatpush1.msra.mxu0 0.0
        %896 = vmatprep.subr.mxu0 0.0
        %897 = vmatpush1.msra.mxu0 0.0
        %898 = vmatprep.subr.mxu0 0.0
        %899 = vmatpush1.msra.mxu0 0.0
        %900 = vmatprep.subr.mxu0 0.0
        %901 = vmatpush1.msra.mxu0 0.0
        %902 = vmatprep.subr.mxu0 0.0
        %903 = vmatpush1.msra.mxu0 0.0
        %904 = vmatprep.subr.mxu0 0.0
        %905 = vmatpush1.msra.mxu0 0.0
        %906 = vmatprep.subr.mxu0 0.0
        %907 = vmatpush1.msra.mxu0 0.0
        %908 = vmatprep.subr.mxu0 0.0
        %909 = vmatpush1.msra.mxu0 0.0
        %910 = vmatprep.subr.mxu0 0.0
        %911 = vmatpush1.msra.mxu0 0.0
        %912 = vmatprep.subr.mxu0 0.0
        %913 = vmatpush1.msra.mxu0 0.0
        %914 = vmatprep.subr.mxu0 0.0
        %915 = vmatpush1.msra.mxu0 0.0
        %916 = vmatprep.subr.mxu0 0.0
        %917 = vmatpush1.msra.mxu0 0.0
        %918 = vmatprep.subr.mxu0 0.0
        %919 = vmatpush1.msra.mxu0 0.0
        %920 = vmatprep.subr.mxu0 0.0
        %921 = vmatpush1.msra.mxu0 0.0
        %922 = vmatprep.subr.mxu0 0.0
        %923 = vmatpush1.msra.mxu0 0.0
        %924 = vmatprep.subr.mxu0 0.0
        %925 = vmatpush1.msra.mxu0 0.0
        %926 = vmatprep.subr.mxu0 0.0
        %927 = vmatpush1.msra.mxu0 0.0
        %928 = vmatprep.subr.mxu0 0.0
        %929 = vmatpush1.msra.mxu0 0.0
        %930 = vmatprep.subr.mxu0 0.0
        %931 = vmatpush1.msra.mxu0 0.0
        %932 = vmatprep.subr.mxu0 0.0
        %933 = vmatpush1.msra.mxu0 0.0
        %934 = vmatprep.subr.mxu0 0.0
        %935 = vmatpush1.msra.mxu0 0.0
        %936 = vmatprep.subr.mxu0 0.0
        %937 = vmatpush1.msra.mxu0 0.0
        %938 = vmatprep.subr.mxu0 0.0
        %939 = vmatpush1.msra.mxu0 0.0
        %940 = vmatprep.subr.mxu0 0.0
        %941 = vmatpush1.msra.mxu0 0.0
        %942 = vmatprep.subr.mxu0 0.0
        %943 = vmatpush1.msra.mxu0 0.0
        %944 = vmatprep.subr.mxu0 0.0
        %945 = vmatpush1.msra.mxu0 0.0
        %946 = vmatprep.subr.mxu0 0.0
        %947 = vmatpush1.msra.mxu0 0.0
        %948 = vmatprep.mubr.f32.mxu0 0.0
        %949 = vmatmul.mubr.f32.gmra.mrb[0].mxu0 %v882
        %v950 = vpop.f32.mrb[0].mxu0
        %v951 = vadd.f32 0.0, %v950
        %v952 = vpop.f32.mrb[0].mxu0
        %953 = vdwg.mxu0
        %954 = vmatprep.subr.mxu0 0.0
        %955 = vmatpush1.msra.mxu0 %v553
        %956 = vmatprep.subr.mxu0 0.0
        %957 = vmatpush1.msra.mxu0 %v554
        %958 = vmatprep.subr.mxu0 0.0
        %959 = vmatpush1.msra.mxu0 %v555
        %960 = vmatprep.subr.mxu0 0.0
        %961 = vmatpush1.msra.mxu0 %v556
        %962 = vmatprep.subr.mxu0 0.0
        %963 = vmatpush1.msra.mxu0 0.0
        %964 = vmatprep.subr.mxu0 0.0
        %965 = vmatpush1.msra.mxu0 0.0
        %966 = vmatprep.subr.mxu0 0.0
        %967 = vmatpush1.msra.mxu0 0.0
        %968 = vmatprep.subr.mxu0 0.0
        %969 = vmatpush1.msra.mxu0 0.0
        %970 = vmatprep.subr.mxu0 0.0
        %971 = vmatpush1.msra.mxu0 0.0
        %972 = vmatprep.subr.mxu0 0.0
        %973 = vmatpush1.msra.mxu0 0.0
        %974 = vmatprep.subr.mxu0 0.0
        %975 = vmatpush1.msra.mxu0 0.0
        %976 = vmatprep.subr.mxu0 0.0
        %977 = vmatpush1.msra.mxu0 0.0
        %978 = vmatprep.subr.mxu0 0.0
        %979 = vmatpush1.msra.mxu0 0.0
        %980 = vmatprep.subr.mxu0 0.0
        %981 = vmatpush1.msra.mxu0 0.0
        %982 = vmatprep.subr.mxu0 0.0
        %983 = vmatpush1.msra.mxu0 0.0
        %984 = vmatprep.subr.mxu0 0.0
        %985 = vmatpush1.msra.mxu0 0.0
        %986 = vmatprep.subr.mxu0 0.0
        %987 = vmatpush1.msra.mxu0 0.0
        %988 = vmatprep.subr.mxu0 0.0
        %989 = vmatpush1.msra.mxu0 0.0
        %990 = vmatprep.subr.mxu0 0.0
        %991 = vmatpush1.msra.mxu0 0.0
        %992 = vmatprep.subr.mxu0 0.0
        %993 = vmatpush1.msra.mxu0 0.0
        %994 = vmatprep.subr.mxu0 0.0
        %995 = vmatpush1.msra.mxu0 0.0
        %996 = vmatprep.subr.mxu0 0.0
        %997 = vmatpush1.msra.mxu0 0.0
        %998 = vmatprep.subr.mxu0 0.0
        %999 = vmatpush1.msra.mxu0 0.0
        %1000 = vmatprep.subr.mxu0 0.0
        %1001 = vmatpush1.msra.mxu0 0.0
        %1002 = vmatprep.subr.mxu0 0.0
        %1003 = vmatpush1.msra.mxu0 0.0
        %1004 = vmatprep.subr.mxu0 0.0
        %1005 = vmatpush1.msra.mxu0 0.0
        %1006 = vmatprep.subr.mxu0 0.0
        %1007 = vmatpush1.msra.mxu0 0.0
        %1008 = vmatprep.subr.mxu0 0.0
        %1009 = vmatpush1.msra.mxu0 0.0
        %1010 = vmatprep.subr.mxu0 0.0
        %1011 = vmatpush1.msra.mxu0 0.0
        %1012 = vmatprep.subr.mxu0 0.0
        %1013 = vmatpush1.msra.mxu0 0.0
        %1014 = vmatprep.subr.mxu0 0.0
        %1015 = vmatpush1.msra.mxu0 0.0
        %1016 = vmatprep.subr.mxu0 0.0
        %1017 = vmatpush1.msra.mxu0 0.0
        %1018 = vmatprep.mubr.f32.mxu0 0.0
        %1019 = vmatmul.mubr.f32.gmra.mrb[0].mxu0 %v882
        %v1020 = vpop.f32.mrb[0].mxu0
        %v1021 = vadd.f32 0.0, %v1020
        %v1022 = vpop.f32.mrb[0].mxu0
        %1023 = vdwg.mxu0
        %1024 = vmatprep.subr.mxu0 0.0
        %1025 = vmatpush1.msra.mxu0 %v557
        %1026 = vmatprep.subr.mxu0 0.0
        %1027 = vmatpush1.msra.mxu0 %v558
        %1028 = vmatprep.subr.mxu0 0.0
        %1029 = vmatpush1.msra.mxu0 %v559
        %1030 = vmatprep.subr.mxu0 0.0
        %1031 = vmatpush1.msra.mxu0 %v560
        %1032 = vmatprep.subr.mxu0 0.0
        %1033 = vmatpush1.msra.mxu0 0.0
        %1034 = vmatprep.subr.mxu0 0.0
        %1035 = vmatpush1.msra.mxu0 0.0
        %1036 = vmatprep.subr.mxu0 0.0
        %1037 = vmatpush1.msra.mxu0 0.0
        %1038 = vmatprep.subr.mxu0 0.0
        %1039 = vmatpush1.msra.mxu0 0.0
        %1040 = vmatprep.subr.mxu0 0.0
        %1041 = vmatpush1.msra.mxu0 0.0
        %1042 = vmatprep.subr.mxu0 0.0
        %1043 = vmatpush1.msra.mxu0 0.0
        %1044 = vmatprep.subr.mxu0 0.0
        %1045 = vmatpush1.msra.mxu0 0.0
        %1046 = vmatprep.subr.mxu0 0.0
        %1047 = vmatpush1.msra.mxu0 0.0
        %1048 = vmatprep.subr.mxu0 0.0
        %1049 = vmatpush1.msra.mxu0 0.0
        %1050 = vmatprep.subr.mxu0 0.0
        %1051 = vmatpush1.msra.mxu0 0.0
        %1052 = vmatprep.subr.mxu0 0.0
        %1053 = vmatpush1.msra.mxu0 0.0
        %1054 = vmatprep.subr.mxu0 0.0
        %1055 = vmatpush1.msra.mxu0 0.0
        %1056 = vmatprep.subr.mxu0 0.0
        %1057 = vmatpush1.msra.mxu0 0.0
        %1058 = vmatprep.subr.mxu0 0.0
        %1059 = vmatpush1.msra.mxu0 0.0
        %1060 = vmatprep.subr.mxu0 0.0
        %1061 = vmatpush1.msra.mxu0 0.0
        %1062 = vmatprep.subr.mxu0 0.0
        %1063 = vmatpush1.msra.mxu0 0.0
        %1064 = vmatprep.subr.mxu0 0.0
        %1065 = vmatpush1.msra.mxu0 0.0
        %1066 = vmatprep.subr.mxu0 0.0
        %1067 = vmatpush1.msra.mxu0 0.0
        %1068 = vmatprep.subr.mxu0 0.0
        %1069 = vmatpush1.msra.mxu0 0.0
        %1070 = vmatprep.subr.mxu0 0.0
        %1071 = vmatpush1.msra.mxu0 0.0
        %1072 = vmatprep.subr.mxu0 0.0
        %1073 = vmatpush1.msra.mxu0 0.0
        %1074 = vmatprep.subr.mxu0 0.0
        %1075 = vmatpush1.msra.mxu0 0.0
        %1076 = vmatprep.subr.mxu0 0.0
        %1077 = vmatpush1.msra.mxu0 0.0
        %1078 = vmatprep.subr.mxu0 0.0
        %1079 = vmatpush1.msra.mxu0 0.0
        %1080 = vmatprep.subr.mxu0 0.0
        %1081 = vmatpush1.msra.mxu0 0.0
        %1082 = vmatprep.subr.mxu0 0.0
        %1083 = vmatpush1.msra.mxu0 0.0
        %1084 = vmatprep.subr.mxu0 0.0
        %1085 = vmatpush1.msra.mxu0 0.0
        %1086 = vmatprep.subr.mxu0 0.0
        %1087 = vmatpush1.msra.mxu0 0.0
        %1088 = vmatprep.mubr.f32.mxu0 0.0
        %1089 = vmatmul.mubr.f32.gmra.mrb[0].mxu0 %v882
        %v1090 = vpop.f32.mrb[0].mxu0
        %v1091 = vadd.f32 0.0, %v1090
        %v1092 = vpop.f32.mrb[0].mxu0
        %1093 = vdwg.mxu0
        %1094 = vmatprep.subr.mxu0 0.0
        %1095 = vmatpush1.msra.mxu0 %v561
        %1096 = vmatprep.subr.mxu0 0.0
        %1097 = vmatpush1.msra.mxu0 %v562
        %1098 = vmatprep.subr.mxu0 0.0
        %1099 = vmatpush1.msra.mxu0 %v563
        %1100 = vmatprep.subr.mxu0 0.0
        %1101 = vmatpush1.msra.mxu0 %v564
        %1102 = vmatprep.subr.mxu0 0.0
        %1103 = vmatpush1.msra.mxu0 0.0
        %1104 = vmatprep.subr.mxu0 0.0
        %1105 = vmatpush1.msra.mxu0 0.0
        %1106 = vmatprep.subr.mxu0 0.0
        %1107 = vmatpush1.msra.mxu0 0.0
        %1108 = vmatprep.subr.mxu0 0.0
        %1109 = vmatpush1.msra.mxu0 0.0
        %1110 = vmatprep.subr.mxu0 0.0
        %1111 = vmatpush1.msra.mxu0 0.0
        %1112 = vmatprep.subr.mxu0 0.0
        %1113 = vmatpush1.msra.mxu0 0.0
        %1114 = vmatprep.subr.mxu0 0.0
        %1115 = vmatpush1.msra.mxu0 0.0
        %1116 = vmatprep.subr.mxu0 0.0
        %1117 = vmatpush1.msra.mxu0 0.0
        %1118 = vmatprep.subr.mxu0 0.0
        %1119 = vmatpush1.msra.mxu0 0.0
        %1120 = vmatprep.subr.mxu0 0.0
        %1121 = vmatpush1.msra.mxu0 0.0
        %1122 = vmatprep.subr.mxu0 0.0
        %1123 = vmatpush1.msra.mxu0 0.0
        %1124 = vmatprep.subr.mxu0 0.0
        %1125 = vmatpush1.msra.mxu0 0.0
        %1126 = vmatprep.subr.mxu0 0.0
        %1127 = vmatpush1.msra.mxu0 0.0
        %1128 = vmatprep.subr.mxu0 0.0
        %1129 = vmatpush1.msra.mxu0 0.0
        %1130 = vmatprep.subr.mxu0 0.0
        %1131 = vmatpush1.msra.mxu0 0.0
        %1132 = vmatprep.subr.mxu0 0.0
        %1133 = vmatpush1.msra.mxu0 0.0
        %1134 = vmatprep.subr.mxu0 0.0
        %1135 = vmatpush1.msra.mxu0 0.0
        %1136 = vmatprep.subr.mxu0 0.0
        %1137 = vmatpush1.msra.mxu0 0.0
        %1138 = vmatprep.subr.mxu0 0.0
        %1139 = vmatpush1.msra.mxu0 0.0
        %1140 = vmatprep.subr.mxu0 0.0
        %1141 = vmatpush1.msra.mxu0 0.0
        %1142 = vmatprep.subr.mxu0 0.0
        %1143 = vmatpush1.msra.mxu0 0.0
        %1144 = vmatprep.subr.mxu0 0.0
        %1145 = vmatpush1.msra.mxu0 0.0
        %1146 = vmatprep.subr.mxu0 0.0
        %1147 = vmatpush1.msra.mxu0 0.0
        %1148 = vmatprep.subr.mxu0 0.0
        %1149 = vmatpush1.msra.mxu0 0.0
        %1150 = vmatprep.subr.mxu0 0.0
        %1151 = vmatpush1.msra.mxu0 0.0
        %1152 = vmatprep.subr.mxu0 0.0
        %1153 = vmatpush1.msra.mxu0 0.0
        %1154 = vmatprep.subr.mxu0 0.0
        %1155 = vmatpush1.msra.mxu0 0.0
        %1156 = vmatprep.subr.mxu0 0.0
        %1157 = vmatpush1.msra.mxu0 0.0
        %1158 = vmatprep.mubr.f32.mxu0 0.0
        %1159 = vmatmul.mubr.f32.gmra.mrb[0].mxu0 %v882
        %v1160 = vpop.f32.mrb[0].mxu0
        %v1161 = vadd.f32 0.0, %v1160
        %v1162 = vpop.f32.mrb[0].mxu0
        %1163 = vdwg.mxu0
        %1164 = vmatprep.subr.mxu0 0.0
        %1165 = vmatpush1.msra.mxu0 %v565
        %1166 = vmatprep.subr.mxu0 0.0
        %1167 = vmatpush1.msra.mxu0 %v566
        %1168 = vmatprep.subr.mxu0 0.0
        %1169 = vmatpush1.msra.mxu0 %v567
        %1170 = vmatprep.subr.mxu0 0.0
        %1171 = vmatpush1.msra.mxu0 %v568
        %1172 = vmatprep.subr.mxu0 0.0
        %1173 = vmatpush1.msra.mxu0 0.0
        %1174 = vmatprep.subr.mxu0 0.0
        %1175 = vmatpush1.msra.mxu0 0.0
        %1176 = vmatprep.subr.mxu0 0.0
        %1177 = vmatpush1.msra.mxu0 0.0
        %1178 = vmatprep.subr.mxu0 0.0
        %1179 = vmatpush1.msra.mxu0 0.0
        %1180 = vmatprep.subr.mxu0 0.0
        %1181 = vmatpush1.msra.mxu0 0.0
        %1182 = vmatprep.subr.mxu0 0.0
        %1183 = vmatpush1.msra.mxu0 0.0
        %1184 = vmatprep.subr.mxu0 0.0
        %1185 = vmatpush1.msra.mxu0 0.0
        %1186 = vmatprep.subr.mxu0 0.0
        %1187 = vmatpush1.msra.mxu0 0.0
        %1188 = vmatprep.subr.mxu0 0.0
        %1189 = vmatpush1.msra.mxu0 0.0
        %1190 = vmatprep.subr.mxu0 0.0
        %1191 = vmatpush1.msra.mxu0 0.0
        %1192 = vmatprep.subr.mxu0 0.0
        %1193 = vmatpush1.msra.mxu0 0.0
        %1194 = vmatprep.subr.mxu0 0.0
        %1195 = vmatpush1.msra.mxu0 0.0
        %1196 = vmatprep.subr.mxu0 0.0
        %1197 = vmatpush1.msra.mxu0 0.0
        %1198 = vmatprep.subr.mxu0 0.0
        %1199 = vmatpush1.msra.mxu0 0.0
        %1200 = vmatprep.subr.mxu0 0.0
        %1201 = vmatpush1.msra.mxu0 0.0
        %1202 = vmatprep.subr.mxu0 0.0
        %1203 = vmatpush1.msra.mxu0 0.0
        %1204 = vmatprep.subr.mxu0 0.0
        %1205 = vmatpush1.msra.mxu0 0.0
        %1206 = vmatprep.subr.mxu0 0.0
        %1207 = vmatpush1.msra.mxu0 0.0
        %1208 = vmatprep.subr.mxu0 0.0
        %1209 = vmatpush1.msra.mxu0 0.0
        %1210 = vmatprep.subr.mxu0 0.0
        %1211 = vmatpush1.msra.mxu0 0.0
        %1212 = vmatprep.subr.mxu0 0.0
        %1213 = vmatpush1.msra.mxu0 0.0
        %1214 = vmatprep.subr.mxu0 0.0
        %1215 = vmatpush1.msra.mxu0 0.0
        %1216 = vmatprep.subr.mxu0 0.0
        %1217 = vmatpush1.msra.mxu0 0.0
        %1218 = vmatprep.subr.mxu0 0.0
        %1219 = vmatpush1.msra.mxu0 0.0
        %1220 = vmatprep.subr.mxu0 0.0
        %1221 = vmatpush1.msra.mxu0 0.0
        %1222 = vmatprep.subr.mxu0 0.0
        %1223 = vmatpush1.msra.mxu0 0.0
        %1224 = vmatprep.subr.mxu0 0.0
        %1225 = vmatpush1.msra.mxu0 0.0
        %1226 = vmatprep.subr.mxu0 0.0
        %1227 = vmatpush1.msra.mxu0 0.0
        %1228 = vmatprep.mubr.f32.mxu0 0.0
        %1229 = vmatmul.mubr.f32.gmra.mrb[0].mxu0 %v882
        %v1230 = vpop.f32.mrb[0].mxu0
        %v1231 = vadd.f32 0.0, %v1230
        %v1232 = vpop.f32.mrb[0].mxu0
        %1233 = vdwg.mxu0
        %1234 = vmatprep.subr.mxu0 0.0
        %1235 = vmatpush1.msra.mxu0 %v569
        %1236 = vmatprep.subr.mxu0 0.0
        %1237 = vmatpush1.msra.mxu0 %v570
        %1238 = vmatprep.subr.mxu0 0.0
        %1239 = vmatpush1.msra.mxu0 %v571
        %1240 = vmatprep.subr.mxu0 0.0
        %1241 = vmatpush1.msra.mxu0 %v572
        %1242 = vmatprep.subr.mxu0 0.0
        %1243 = vmatpush1.msra.mxu0 0.0
        %1244 = vmatprep.subr.mxu0 0.0
        %1245 = vmatpush1.msra.mxu0 0.0
        %1246 = vmatprep.subr.mxu0 0.0
        %1247 = vmatpush1.msra.mxu0 0.0
        %1248 = vmatprep.subr.mxu0 0.0
        %1249 = vmatpush1.msra.mxu0 0.0
        %1250 = vmatprep.subr.mxu0 0.0
        %1251 = vmatpush1.msra.mxu0 0.0
        %1252 = vmatprep.subr.mxu0 0.0
        %1253 = vmatpush1.msra.mxu0 0.0
        %1254 = vmatprep.subr.mxu0 0.0
        %1255 = vmatpush1.msra.mxu0 0.0
        %1256 = vmatprep.subr.mxu0 0.0
        %1257 = vmatpush1.msra.mxu0 0.0
        %1258 = vmatprep.subr.mxu0 0.0
        %1259 = vmatpush1.msra.mxu0 0.0
        %1260 = vmatprep.subr.mxu0 0.0
        %1261 = vmatpush1.msra.mxu0 0.0
        %1262 = vmatprep.subr.mxu0 0.0
        %1263 = vmatpush1.msra.mxu0 0.0
        %1264 = vmatprep.subr.mxu0 0.0
        %1265 = vmatpush1.msra.mxu0 0.0
        %1266 = vmatprep.subr.mxu0 0.0
        %1267 = vmatpush1.msra.mxu0 0.0
        %1268 = vmatprep.subr.mxu0 0.0
        %1269 = vmatpush1.msra.mxu0 0.0
        %1270 = vmatprep.subr.mxu0 0.0
        %1271 = vmatpush1.msra.mxu0 0.0
        %1272 = vmatprep.subr.mxu0 0.0
        %1273 = vmatpush1.msra.mxu0 0.0
        %1274 = vmatprep.subr.mxu0 0.0
        %1275 = vmatpush1.msra.mxu0 0.0
        %1276 = vmatprep.subr.mxu0 0.0
        %1277 = vmatpush1.msra.mxu0 0.0
        %1278 = vmatprep.subr.mxu0 0.0
        %1279 = vmatpush1.msra.mxu0 0.0
        %1280 = vmatprep.subr.mxu0 0.0
        %1281 = vmatpush1.msra.mxu0 0.0
        %1282 = vmatprep.subr.mxu0 0.0
        %1283 = vmatpush1.msra.mxu0 0.0
        %1284 = vmatprep.subr.mxu0 0.0
        %1285 = vmatpush1.msra.mxu0 0.0
        %1286 = vmatprep.subr.mxu0 0.0
        %1287 = vmatpush1.msra.mxu0 0.0
        %1288 = vmatprep.subr.mxu0 0.0
        %1289 = vmatpush1.msra.mxu0 0.0
        %1290 = vmatprep.subr.mxu0 0.0
        %1291 = vmatpush1.msra.mxu0 0.0
        %1292 = vmatprep.subr.mxu0 0.0
        %1293 = vmatpush1.msra.mxu0 0.0
        %1294 = vmatprep.subr.mxu0 0.0
        %1295 = vmatpush1.msra.mxu0 0.0
        %1296 = vmatprep.subr.mxu0 0.0
        %1297 = vmatpush1.msra.mxu0 0.0
        %1298 = vmatprep.mubr.f32.mxu0 0.0
        %1299 = vmatmul.mubr.f32.gmra.mrb[0].mxu0 %v882
        %v1300 = vpop.f32.mrb[0].mxu0
        %v1301 = vadd.f32 0.0, %v1300
        %v1302 = vpop.f32.mrb[0].mxu0
        %1303 = vdwg.mxu0
        %1304 = vmatprep.subr.mxu0 0.0
        %1305 = vmatpush1.msra.mxu0 %v573
        %1306 = vmatprep.subr.mxu0 0.0
        %1307 = vmatpush1.msra.mxu0 %v574
        %1308 = vmatprep.subr.mxu0 0.0
        %1309 = vmatpush1.msra.mxu0 %v575
        %1310 = vmatprep.subr.mxu0 0.0
        %1311 = vmatpush1.msra.mxu0 %v576
        %1312 = vmatprep.subr.mxu0 0.0
        %1313 = vmatpush1.msra.mxu0 0.0
        %1314 = vmatprep.subr.mxu0 0.0
        %1315 = vmatpush1.msra.mxu0 0.0
        %1316 = vmatprep.subr.mxu0 0.0
        %1317 = vmatpush1.msra.mxu0 0.0
        %1318 = vmatprep.subr.mxu0 0.0
        %1319 = vmatpush1.msra.mxu0 0.0
        %1320 = vmatprep.subr.mxu0 0.0
        %1321 = vmatpush1.msra.mxu0 0.0
        %1322 = vmatprep.subr.mxu0 0.0
        %1323 = vmatpush1.msra.mxu0 0.0
        %1324 = vmatprep.subr.mxu0 0.0
        %1325 = vmatpush1.msra.mxu0 0.0
        %1326 = vmatprep.subr.mxu0 0.0
        %1327 = vmatpush1.msra.mxu0 0.0
        %1328 = vmatprep.subr.mxu0 0.0
        %1329 = vmatpush1.msra.mxu0 0.0
        %1330 = vmatprep.subr.mxu0 0.0
        %1331 = vmatpush1.msra.mxu0 0.0
        %1332 = vmatprep.subr.mxu0 0.0
        %1333 = vmatpush1.msra.mxu0 0.0
        %1334 = vmatprep.subr.mxu0 0.0
        %1335 = vmatpush1.msra.mxu0 0.0
        %1336 = vmatprep.subr.mxu0 0.0
        %1337 = vmatpush1.msra.mxu0 0.0
        %1338 = vmatprep.subr.mxu0 0.0
        %1339 = vmatpush1.msra.mxu0 0.0
        %1340 = vmatprep.subr.mxu0 0.0
        %1341 = vmatpush1.msra.mxu0 0.0
        %1342 = vmatprep.subr.mxu0 0.0
        %1343 = vmatpush1.msra.mxu0 0.0
        %1344 = vmatprep.subr.mxu0 0.0
        %1345 = vmatpush1.msra.mxu0 0.0
        %1346 = vmatprep.subr.mxu0 0.0
        %1347 = vmatpush1.msra.mxu0 0.0
        %1348 = vmatprep.subr.mxu0 0.0
        %1349 = vmatpush1.msra.mxu0 0.0
        %1350 = vmatprep.subr.mxu0 0.0
        %1351 = vmatpush1.msra.mxu0 0.0
        %1352 = vmatprep.subr.mxu0 0.0
        %1353 = vmatpush1.msra.mxu0 0.0
        %1354 = vmatprep.subr.mxu0 0.0
        %1355 = vmatpush1.msra.mxu0 0.0
        %1356 = vmatprep.subr.mxu0 0.0
        %1357 = vmatpush1.msra.mxu0 0.0
        %1358 = vmatprep.subr.mxu0 0.0
        %1359 = vmatpush1.msra.mxu0 0.0
        %1360 = vmatprep.subr.mxu0 0.0
        %1361 = vmatpush1.msra.mxu0 0.0
        %1362 = vmatprep.subr.mxu0 0.0
        %1363 = vmatpush1.msra.mxu0 0.0
        %1364 = vmatprep.subr.mxu0 0.0
        %1365 = vmatpush1.msra.mxu0 0.0
        %1366 = vmatprep.subr.mxu0 0.0
        %1367 = vmatpush1.msra.mxu0 0.0
        %1368 = vmatprep.mubr.f32.mxu0 0.0
        %1369 = vmatmul.mubr.f32.gmra.mrb[0].mxu0 %v882
        %v1370 = vpop.f32.mrb[0].mxu0
        %v1371 = vadd.f32 0.0, %v1370
        %v1372 = vpop.f32.mrb[0].mxu0
        %1373 = vdwg.mxu0
        %1374 = vmatprep.subr.mxu0 0.0
        %1375 = vmatpush1.msra.mxu0 %v577
        %1376 = vmatprep.subr.mxu0 0.0
        %1377 = vmatpush1.msra.mxu0 %v578
        %1378 = vmatprep.subr.mxu0 0.0
        %1379 = vmatpush1.msra.mxu0 %v579
        %1380 = vmatprep.subr.mxu0 0.0
        %1381 = vmatpush1.msra.mxu0 %v580
        %1382 = vmatprep.subr.mxu0 0.0
        %1383 = vmatpush1.msra.mxu0 0.0
        %1384 = vmatprep.subr.mxu0 0.0
        %1385 = vmatpush1.msra.mxu0 0.0
        %1386 = vmatprep.subr.mxu0 0.0
        %1387 = vmatpush1.msra.mxu0 0.0
        %1388 = vmatprep.subr.mxu0 0.0
        %1389 = vmatpush1.msra.mxu0 0.0
        %1390 = vmatprep.subr.mxu0 0.0
        %1391 = vmatpush1.msra.mxu0 0.0
        %1392 = vmatprep.subr.mxu0 0.0
        %1393 = vmatpush1.msra.mxu0 0.0
        %1394 = vmatprep.subr.mxu0 0.0
        %1395 = vmatpush1.msra.mxu0 0.0
        %1396 = vmatprep.subr.mxu0 0.0
        %1397 = vmatpush1.msra.mxu0 0.0
        %1398 = vmatprep.subr.mxu0 0.0
        %1399 = vmatpush1.msra.mxu0 0.0
        %1400 = vmatprep.subr.mxu0 0.0
        %1401 = vmatpush1.msra.mxu0 0.0
        %1402 = vmatprep.subr.mxu0 0.0
        %1403 = vmatpush1.msra.mxu0 0.0
        %1404 = vmatprep.subr.mxu0 0.0
        %1405 = vmatpush1.msra.mxu0 0.0
        %1406 = vmatprep.subr.mxu0 0.0
        %1407 = vmatpush1.msra.mxu0 0.0
        %1408 = vmatprep.subr.mxu0 0.0
        %1409 = vmatpush1.msra.mxu0 0.0
        %1410 = vmatprep.subr.mxu0 0.0
        %1411 = vmatpush1.msra.mxu0 0.0
        %1412 = vmatprep.subr.mxu0 0.0
        %1413 = vmatpush1.msra.mxu0 0.0
        %1414 = vmatprep.subr.mxu0 0.0
        %1415 = vmatpush1.msra.mxu0 0.0
        %1416 = vmatprep.subr.mxu0 0.0
        %1417 = vmatpush1.msra.mxu0 0.0
        %1418 = vmatprep.subr.mxu0 0.0
        %1419 = vmatpush1.msra.mxu0 0.0
        %1420 = vmatprep.subr.mxu0 0.0
        %1421 = vmatpush1.msra.mxu0 0.0
        %1422 = vmatprep.subr.mxu0 0.0
        %1423 = vmatpush1.msra.mxu0 0.0
        %1424 = vmatprep.subr.mxu0 0.0
        %1425 = vmatpush1.msra.mxu0 0.0
        %1426 = vmatprep.subr.mxu0 0.0
        %1427 = vmatpush1.msra.mxu0 0.0
        %1428 = vmatprep.subr.mxu0 0.0
        %1429 = vmatpush1.msra.mxu0 0.0
        %1430 = vmatprep.subr.mxu0 0.0
        %1431 = vmatpush1.msra.mxu0 0.0
        %1432 = vmatprep.subr.mxu0 0.0
        %1433 = vmatpush1.msra.mxu0 0.0
        %1434 = vmatprep.subr.mxu0 0.0
        %1435 = vmatpush1.msra.mxu0 0.0
        %1436 = vmatprep.subr.mxu0 0.0
        %1437 = vmatpush1.msra.mxu0 0.0
        %1438 = vmatprep.mubr.f32.mxu0 0.0
        %1439 = vmatmul.mubr.f32.gmra.mrb[0].mxu0 %v882
        %v1440 = vpop.f32.mrb[0].mxu0
        %v1441 = vadd.f32 0.0, %v1440
        %v1442 = vpop.f32.mrb[0].mxu0
        %1443 = vdwg.mxu0
        %vm1444 = vcmask 64512
        %v1446 = vsel %vm1444, %v668, 0
        %v1449 = vsel %vm1444, %v951, 0
        %1451 = vmatprep.subr.mxu0 0.0
        %1452 = vmatpush1.xpose.msra.mxu0 %v1449
        %1453 = vmatprep.subr.mxu0 0.0
        %1454 = vmatpush1.xpose.msra.mxu0 0.0
        %1455 = vmatprep.subr.mxu0 0.0
        %1456 = vmatpush1.xpose.msra.mxu0 0.0
        %1457 = vmatprep.subr.mxu0 0.0
        %1458 = vmatpush1.xpose.msra.mxu0 0.0
        %1459 = vmatprep.subr.mxu0 0.0
        %1460 = vmatpush1.xpose.msra.mxu0 0.0
        %1461 = vmatprep.subr.mxu0 0.0
        %1462 = vmatpush1.xpose.msra.mxu0 0.0
        %1463 = vmatprep.subr.mxu0 0.0
        %1464 = vmatpush1.xpose.msra.mxu0 0.0
        %1465 = vmatprep.subr.mxu0 0.0
        %1466 = vmatpush1.xpose.msra.mxu0 0.0
        %1467 = vmatprep.subr.mxu0 0.0
        %1468 = vmatpush1.xpose.msra.mxu0 0.0
        %1469 = vmatprep.subr.mxu0 0.0
        %1470 = vmatpush1.xpose.msra.mxu0 0.0
        %1471 = vmatprep.subr.mxu0 0.0
        %1472 = vmatpush1.xpose.msra.mxu0 0.0
        %1473 = vmatprep.subr.mxu0 0.0
        %1474 = vmatpush1.xpose.msra.mxu0 0.0
        %1475 = vmatprep.subr.mxu0 0.0
        %1476 = vmatpush1.xpose.msra.mxu0 0.0
        %1477 = vmatprep.subr.mxu0 0.0
        %1478 = vmatpush1.xpose.msra.mxu0 0.0
        %1479 = vmatprep.subr.mxu0 0.0
        %1480 = vmatpush1.xpose.msra.mxu0 0.0
        %1481 = vmatprep.subr.mxu0 0.0
        %1482 = vmatpush1.xpose.msra.mxu0 0.0
        %1483 = vmatprep.subr.mxu0 0.0
        %1484 = vmatpush1.xpose.msra.mxu0 0.0
        %1485 = vmatprep.subr.mxu0 0.0
        %1486 = vmatpush1.xpose.msra.mxu0 0.0
        %1487 = vmatprep.subr.mxu0 0.0
        %1488 = vmatpush1.xpose.msra.mxu0 0.0
        %1489 = vmatprep.subr.mxu0 0.0
        %1490 = vmatpush1.xpose.msra.mxu0 0.0
        %1491 = vmatprep.subr.mxu0 0.0
        %1492 = vmatpush1.xpose.msra.mxu0 0.0
        %1493 = vmatprep.subr.mxu0 0.0
        %1494 = vmatpush1.xpose.msra.mxu0 0.0
        %1495 = vmatprep.subr.mxu0 0.0
        %1496 = vmatpush1.xpose.msra.mxu0 0.0
        %1497 = vmatprep.subr.mxu0 0.0
        %1498 = vmatpush1.xpose.msra.mxu0 0.0
        %1499 = vmatprep.subr.mxu0 0.0
        %1500 = vmatpush1.xpose.msra.mxu0 0.0
        %1501 = vmatprep.subr.mxu0 0.0
        %1502 = vmatpush1.xpose.msra.mxu0 0.0
        %1503 = vmatprep.subr.mxu0 0.0
        %1504 = vmatpush1.xpose.msra.mxu0 0.0
        %1505 = vmatprep.subr.mxu0 0.0
        %1506 = vmatpush1.xpose.msra.mxu0 0.0
        %1507 = vmatprep.subr.mxu0 0.0
        %1508 = vmatpush1.xpose.msra.mxu0 0.0
        %1509 = vmatprep.subr.mxu0 0.0
        %1510 = vmatpush1.xpose.msra.mxu0 0.0
        %1511 = vmatprep.subr.mxu0 0.0
        %1512 = vmatpush1.xpose.msra.mxu0 0.0
        %1513 = vmatprep.subr.mxu0 0.0
        %1514 = vmatpush1.xpose.msra.mxu0 0.0
        %1515 = vmatprep.mubr.f32.mxu0 0.0
        %1516 = vmatmul.mubr.f32.gmra.mrb[0].mxu0 %v1446
        %v1517 = vpop.f32.mrb[0].mxu0
        %v1518 = vadd.f32 0.0, %v1517
        %v1519 = vpop.f32.mrb[0].mxu0
        %1520 = vdwg.mxu0
        %v1522 = vsel %vm1444, %v738, 0
        %v1525 = vsel %vm1444, %v1021, 0
        %1527 = vmatprep.subr.mxu0 0.0
        %1528 = vmatpush1.xpose.msra.mxu0 %v1525
        %1529 = vmatprep.subr.mxu0 0.0
        %1530 = vmatpush1.xpose.msra.mxu0 0.0
        %1531 = vmatprep.subr.mxu0 0.0
        %1532 = vmatpush1.xpose.msra.mxu0 0.0
        %1533 = vmatprep.subr.mxu0 0.0
        %1534 = vmatpush1.xpose.msra.mxu0 0.0
        %1535 = vmatprep.subr.mxu0 0.0
        %1536 = vmatpush1.xpose.msra.mxu0 0.0
        %1537 = vmatprep.subr.mxu0 0.0
        %1538 = vmatpush1.xpose.msra.mxu0 0.0
        %1539 = vmatprep.subr.mxu0 0.0
        %1540 = vmatpush1.xpose.msra.mxu0 0.0
        %1541 = vmatprep.subr.mxu0 0.0
        %1542 = vmatpush1.xpose.msra.mxu0 0.0
        %1543 = vmatprep.subr.mxu0 0.0
        %1544 = vmatpush1.xpose.msra.mxu0 0.0
        %1545 = vmatprep.subr.mxu0 0.0
        %1546 = vmatpush1.xpose.msra.mxu0 0.0
        %1547 = vmatprep.subr.mxu0 0.0
        %1548 = vmatpush1.xpose.msra.mxu0 0.0
        %1549 = vmatprep.subr.mxu0 0.0
        %1550 = vmatpush1.xpose.msra.mxu0 0.0
        %1551 = vmatprep.subr.mxu0 0.0
        %1552 = vmatpush1.xpose.msra.mxu0 0.0
        %1553 = vmatprep.subr.mxu0 0.0
        %1554 = vmatpush1.xpose.msra.mxu0 0.0
        %1555 = vmatprep.subr.mxu0 0.0
        %1556 = vmatpush1.xpose.msra.mxu0 0.0
        %1557 = vmatprep.subr.mxu0 0.0
        %1558 = vmatpush1.xpose.msra.mxu0 0.0
        %1559 = vmatprep.subr.mxu0 0.0
        %1560 = vmatpush1.xpose.msra.mxu0 0.0
        %1561 = vmatprep.subr.mxu0 0.0
        %1562 = vmatpush1.xpose.msra.mxu0 0.0
        %1563 = vmatprep.subr.mxu0 0.0
        %1564 = vmatpush1.xpose.msra.mxu0 0.0
        %1565 = vmatprep.subr.mxu0 0.0
        %1566 = vmatpush1.xpose.msra.mxu0 0.0
        %1567 = vmatprep.subr.mxu0 0.0
        %1568 = vmatpush1.xpose.msra.mxu0 0.0
        %1569 = vmatprep.subr.mxu0 0.0
        %1570 = vmatpush1.xpose.msra.mxu0 0.0
        %1571 = vmatprep.subr.mxu0 0.0
        %1572 = vmatpush1.xpose.msra.mxu0 0.0
        %1573 = vmatprep.subr.mxu0 0.0
        %1574 = vmatpush1.xpose.msra.mxu0 0.0
        %1575 = vmatprep.subr.mxu0 0.0
        %1576 = vmatpush1.xpose.msra.mxu0 0.0
        %1577 = vmatprep.subr.mxu0 0.0
        %1578 = vmatpush1.xpose.msra.mxu0 0.0
        %1579 = vmatprep.subr.mxu0 0.0
        %1580 = vmatpush1.xpose.msra.mxu0 0.0
        %1581 = vmatprep.subr.mxu0 0.0
        %1582 = vmatpush1.xpose.msra.mxu0 0.0
        %1583 = vmatprep.subr.mxu0 0.0
        %1584 = vmatpush1.xpose.msra.mxu0 0.0
        %1585 = vmatprep.subr.mxu0 0.0
        %1586 = vmatpush1.xpose.msra.mxu0 0.0
        %1587 = vmatprep.subr.mxu0 0.0
        %1588 = vmatpush1.xpose.msra.mxu0 0.0
        %1589 = vmatprep.subr.mxu0 0.0
        %1590 = vmatpush1.xpose.msra.mxu0 0.0
        %1591 = vmatprep.mubr.f32.mxu0 0.0
        %1592 = vmatmul.mubr.f32.gmra.mrb[0].mxu0 %v1522
        %v1593 = vpop.f32.mrb[0].mxu0
        %v1594 = vadd.f32 0.0, %v1593
        %v1595 = vpop.f32.mrb[0].mxu0
        %1596 = vdwg.mxu0
        %v1598 = vsel %vm1444, %v808, 0
        %v1601 = vsel %vm1444, %v1091, 0
        %1603 = vmatprep.subr.mxu0 0.0
        %1604 = vmatpush1.xpose.msra.mxu0 %v1601
        %1605 = vmatprep.subr.mxu0 0.0
        %1606 = vmatpush1.xpose.msra.mxu0 0.0
        %1607 = vmatprep.subr.mxu0 0.0
        %1608 = vmatpush1.xpose.msra.mxu0 0.0
        %1609 = vmatprep.subr.mxu0 0.0
        %1610 = vmatpush1.xpose.msra.mxu0 0.0
        %1611 = vmatprep.subr.mxu0 0.0
        %1612 = vmatpush1.xpose.msra.mxu0 0.0
        %1613 = vmatprep.subr.mxu0 0.0
        %1614 = vmatpush1.xpose.msra.mxu0 0.0
        %1615 = vmatprep.subr.mxu0 0.0
        %1616 = vmatpush1.xpose.msra.mxu0 0.0
        %1617 = vmatprep.subr.mxu0 0.0
        %1618 = vmatpush1.xpose.msra.mxu0 0.0
        %1619 = vmatprep.subr.mxu0 0.0
        %1620 = vmatpush1.xpose.msra.mxu0 0.0
        %1621 = vmatprep.subr.mxu0 0.0
        %1622 = vmatpush1.xpose.msra.mxu0 0.0
        %1623 = vmatprep.subr.mxu0 0.0
        %1624 = vmatpush1.xpose.msra.mxu0 0.0
        %1625 = vmatprep.subr.mxu0 0.0
        %1626 = vmatpush1.xpose.msra.mxu0 0.0
        %1627 = vmatprep.subr.mxu0 0.0
        %1628 = vmatpush1.xpose.msra.mxu0 0.0
        %1629 = vmatprep.subr.mxu0 0.0
        %1630 = vmatpush1.xpose.msra.mxu0 0.0
        %1631 = vmatprep.subr.mxu0 0.0
        %1632 = vmatpush1.xpose.msra.mxu0 0.0
        %1633 = vmatprep.subr.mxu0 0.0
        %1634 = vmatpush1.xpose.msra.mxu0 0.0
        %1635 = vmatprep.subr.mxu0 0.0
        %1636 = vmatpush1.xpose.msra.mxu0 0.0
        %1637 = vmatprep.subr.mxu0 0.0
        %1638 = vmatpush1.xpose.msra.mxu0 0.0
        %1639 = vmatprep.subr.mxu0 0.0
        %1640 = vmatpush1.xpose.msra.mxu0 0.0
        %1641 = vmatprep.subr.mxu0 0.0
        %1642 = vmatpush1.xpose.msra.mxu0 0.0
        %1643 = vmatprep.subr.mxu0 0.0
        %1644 = vmatpush1.xpose.msra.mxu0 0.0
        %1645 = vmatprep.subr.mxu0 0.0
        %1646 = vmatpush1.xpose.msra.mxu0 0.0
        %1647 = vmatprep.subr.mxu0 0.0
        %1648 = vmatpush1.xpose.msra.mxu0 0.0
        %1649 = vmatprep.subr.mxu0 0.0
        %1650 = vmatpush1.xpose.msra.mxu0 0.0
        %1651 = vmatprep.subr.mxu0 0.0
        %1652 = vmatpush1.xpose.msra.mxu0 0.0
        %1653 = vmatprep.subr.mxu0 0.0
        %1654 = vmatpush1.xpose.msra.mxu0 0.0
        %1655 = vmatprep.subr.mxu0 0.0
        %1656 = vmatpush1.xpose.msra.mxu0 0.0
        %1657 = vmatprep.subr.mxu0 0.0
        %1658 = vmatpush1.xpose.msra.mxu0 0.0
        %1659 = vmatprep.subr.mxu0 0.0
        %1660 = vmatpush1.xpose.msra.mxu0 0.0
        %1661 = vmatprep.subr.mxu0 0.0
        %1662 = vmatpush1.xpose.msra.mxu0 0.0
        %1663 = vmatprep.subr.mxu0 0.0
        %1664 = vmatpush1.xpose.msra.mxu0 0.0
        %1665 = vmatprep.subr.mxu0 0.0
        %1666 = vmatpush1.xpose.msra.mxu0 0.0
        %1667 = vmatprep.mubr.f32.mxu0 0.0
        %1668 = vmatmul.mubr.f32.gmra.mrb[0].mxu0 %v1598
        %v1669 = vpop.f32.mrb[0].mxu0
        %v1670 = vadd.f32 0.0, %v1669
        %v1671 = vpop.f32.mrb[0].mxu0
        %1672 = vdwg.mxu0
        %v1674 = vsel %vm1444, %v878, 0
        %v1677 = vsel %vm1444, %v1161, 0
        %1679 = vmatprep.subr.mxu0 0.0
        %1680 = vmatpush1.xpose.msra.mxu0 %v1677
        %1681 = vmatprep.subr.mxu0 0.0
        %1682 = vmatpush1.xpose.msra.mxu0 0.0
        %1683 = vmatprep.subr.mxu0 0.0
        %1684 = vmatpush1.xpose.msra.mxu0 0.0
        %1685 = vmatprep.subr.mxu0 0.0
        %1686 = vmatpush1.xpose.msra.mxu0 0.0
        %1687 = vmatprep.subr.mxu0 0.0
        %1688 = vmatpush1.xpose.msra.mxu0 0.0
        %1689 = vmatprep.subr.mxu0 0.0
        %1690 = vmatpush1.xpose.msra.mxu0 0.0
        %1691 = vmatprep.subr.mxu0 0.0
        %1692 = vmatpush1.xpose.msra.mxu0 0.0
        %1693 = vmatprep.subr.mxu0 0.0
        %1694 = vmatpush1.xpose.msra.mxu0 0.0
        %1695 = vmatprep.subr.mxu0 0.0
        %1696 = vmatpush1.xpose.msra.mxu0 0.0
        %1697 = vmatprep.subr.mxu0 0.0
        %1698 = vmatpush1.xpose.msra.mxu0 0.0
        %1699 = vmatprep.subr.mxu0 0.0
        %1700 = vmatpush1.xpose.msra.mxu0 0.0
        %1701 = vmatprep.subr.mxu0 0.0
        %1702 = vmatpush1.xpose.msra.mxu0 0.0
        %1703 = vmatprep.subr.mxu0 0.0
        %1704 = vmatpush1.xpose.msra.mxu0 0.0
        %1705 = vmatprep.subr.mxu0 0.0
        %1706 = vmatpush1.xpose.msra.mxu0 0.0
        %1707 = vmatprep.subr.mxu0 0.0
        %1708 = vmatpush1.xpose.msra.mxu0 0.0
        %1709 = vmatprep.subr.mxu0 0.0
        %1710 = vmatpush1.xpose.msra.mxu0 0.0
        %1711 = vmatprep.subr.mxu0 0.0
        %1712 = vmatpush1.xpose.msra.mxu0 0.0
        %1713 = vmatprep.subr.mxu0 0.0
        %1714 = vmatpush1.xpose.msra.mxu0 0.0
        %1715 = vmatprep.subr.mxu0 0.0
        %1716 = vmatpush1.xpose.msra.mxu0 0.0
        %1717 = vmatprep.subr.mxu0 0.0
        %1718 = vmatpush1.xpose.msra.mxu0 0.0
        %1719 = vmatprep.subr.mxu0 0.0
        %1720 = vmatpush1.xpose.msra.mxu0 0.0
        %1721 = vmatprep.subr.mxu0 0.0
        %1722 = vmatpush1.xpose.msra.mxu0 0.0
        %1723 = vmatprep.subr.mxu0 0.0
        %1724 = vmatpush1.xpose.msra.mxu0 0.0
        %1725 = vmatprep.subr.mxu0 0.0
        %1726 = vmatpush1.xpose.msra.mxu0 0.0
        %1727 = vmatprep.subr.mxu0 0.0
        %1728 = vmatpush1.xpose.msra.mxu0 0.0
        %1729 = vmatprep.subr.mxu0 0.0
        %1730 = vmatpush1.xpose.msra.mxu0 0.0
        %1731 = vmatprep.subr.mxu0 0.0
        %1732 = vmatpush1.xpose.msra.mxu0 0.0
        %1733 = vmatprep.subr.mxu0 0.0
        %1734 = vmatpush1.xpose.msra.mxu0 0.0
        %1735 = vmatprep.subr.mxu0 0.0
        %1736 = vmatpush1.xpose.msra.mxu0 0.0
        %1737 = vmatprep.subr.mxu0 0.0
        %1738 = vmatpush1.xpose.msra.mxu0 0.0
        %1739 = vmatprep.subr.mxu0 0.0
        %1740 = vmatpush1.xpose.msra.mxu0 0.0
        %1741 = vmatprep.subr.mxu0 0.0
        %1742 = vmatpush1.xpose.msra.mxu0 0.0
        %1743 = vmatprep.mubr.f32.mxu0 0.0
        %1744 = vmatmul.mubr.f32.gmra.mrb[0].mxu0 %v1674
        %v1745 = vpop.f32.mrb[0].mxu0
        %v1746 = vadd.f32 0.0, %v1745
        %v1747 = vpop.f32.mrb[0].mxu0
        %1748 = vdwg.mxu0
        %v1749 = vsel %vm1444, %v1518, -inf
        %1750 = vmax.xlane.f32.xlu0 %v1749
        %v1751 = vpop.xlane.xlu0 %1750
        %v1752 = vsel %vm1444, %v1594, -inf
        %1753 = vmax.xlane.f32.xlu0 %v1752
        %v1754 = vpop.xlane.xlu0 %1753
        %v1755 = vsel %vm1444, %v1670, -inf
        %1756 = vmax.xlane.f32.xlu0 %v1755
        %v1757 = vpop.xlane.xlu0 %1756
        %v1758 = vsel %vm1444, %v1746, -inf
        %1759 = vmax.xlane.f32.xlu0 %v1758
        %v1760 = vpop.xlane.xlu0 %1759
        %v1761 = vsub.f32 %v1518, %v1751
        %v1762 = vsub.f32 %v1594, %v1754
        %v1763 = vsub.f32 %v1670, %v1757
        %v1764 = vsub.f32 %v1746, %v1760
        %v1765 = vmul.f32 %v1761, 1.442695
        %v1766 = vpow.pop %v1765
        %v1767 = vmul.f32 %v1762, 1.442695
        %v1768 = vpow.pop %v1767
        %v1769 = vmul.f32 %v1763, 1.442695
        %v1770 = vpow.pop %v1769
        %v1771 = vmul.f32 %v1764, 1.442695
        %v1772 = vpow.pop %v1771
        %v1773 = vsel %vm1444, %v1766, 0.0
        %1774 = vadd.xlane.f32.xlu0 %v1773
        %v1775 = vpop.xlane.xlu0 %1774
        %v1776 = vsel %vm1444, %v1768, 0.0
        %1777 = vadd.xlane.f32.xlu0 %v1776
        %v1778 = vpop.xlane.xlu0 %1777
        %v1779 = vsel %vm1444, %v1770, 0.0
        %1780 = vadd.xlane.f32.xlu0 %v1779
        %v1781 = vpop.xlane.xlu0 %1780
        %v1782 = vsel %vm1444, %v1772, 0.0
        %1783 = vadd.xlane.f32.xlu0 %v1782
        %v1784 = vpop.xlane.xlu0 %1783
        %v1785 = vrcp.pop %v1775
        %v1786 = vrcp.pop %v1778
        %v1787 = vrcp.pop %v1781
        %v1788 = vrcp.pop %v1784
        %v1789 = vmul.f32 %v1766, %v1785
        %v1790 = vmul.f32 %v1768, %v1786
        %v1791 = vmul.f32 %v1770, %v1787
        %v1792 = vmul.f32 %v1772, %v1788
        %v1794 = vsel %vm1444, %v1789, 0
        %1796 = vmatprep.subr.mxu0 0.0
        %1797 = vmatpush1.msra.mxu0 %v1231
        %1798 = vmatprep.subr.mxu0 0.0
        %1799 = vmatpush1.msra.mxu0 0.0
        %1800 = vmatprep.subr.mxu0 0.0
        %1801 = vmatpush1.msra.mxu0 0.0
        %1802 = vmatprep.subr.mxu0 0.0
        %1803 = vmatpush1.msra.mxu0 0.0
        %1804 = vmatprep.subr.mxu0 0.0
        %1805 = vmatpush1.msra.mxu0 0.0
        %1806 = vmatprep.subr.mxu0 0.0
        %1807 = vmatpush1.msra.mxu0 0.0
        %1808 = vmatprep.subr.mxu0 0.0
        %1809 = vmatpush1.msra.mxu0 0.0
        %1810 = vmatprep.subr.mxu0 0.0
        %1811 = vmatpush1.msra.mxu0 0.0
        %1812 = vmatprep.subr.mxu0 0.0
        %1813 = vmatpush1.msra.mxu0 0.0
        %1814 = vmatprep.subr.mxu0 0.0
        %1815 = vmatpush1.msra.mxu0 0.0
        %1816 = vmatprep.subr.mxu0 0.0
        %1817 = vmatpush1.msra.mxu0 0.0
        %1818 = vmatprep.subr.mxu0 0.0
        %1819 = vmatpush1.msra.mxu0 0.0
        %1820 = vmatprep.subr.mxu0 0.0
        %1821 = vmatpush1.msra.mxu0 0.0
        %1822 = vmatprep.subr.mxu0 0.0
        %1823 = vmatpush1.msra.mxu0 0.0
        %1824 = vmatprep.subr.mxu0 0.0
        %1825 = vmatpush1.msra.mxu0 0.0
        %1826 = vmatprep.subr.mxu0 0.0
        %1827 = vmatpush1.msra.mxu0 0.0
        %1828 = vmatprep.subr.mxu0 0.0
        %1829 = vmatpush1.msra.mxu0 0.0
        %1830 = vmatprep.subr.mxu0 0.0
        %1831 = vmatpush1.msra.mxu0 0.0
        %1832 = vmatprep.subr.mxu0 0.0
        %1833 = vmatpush1.msra.mxu0 0.0
        %1834 = vmatprep.subr.mxu0 0.0
        %1835 = vmatpush1.msra.mxu0 0.0
        %1836 = vmatprep.subr.mxu0 0.0
        %1837 = vmatpush1.msra.mxu0 0.0
        %1838 = vmatprep.subr.mxu0 0.0
        %1839 = vmatpush1.msra.mxu0 0.0
        %1840 = vmatprep.subr.mxu0 0.0
        %1841 = vmatpush1.msra.mxu0 0.0
        %1842 = vmatprep.subr.mxu0 0.0
        %1843 = vmatpush1.msra.mxu0 0.0
        %1844 = vmatprep.subr.mxu0 0.0
        %1845 = vmatpush1.msra.mxu0 0.0
        %1846 = vmatprep.subr.mxu0 0.0
        %1847 = vmatpush1.msra.mxu0 0.0
        %1848 = vmatprep.subr.mxu0 0.0
        %1849 = vmatpush1.msra.mxu0 0.0
        %1850 = vmatprep.subr.mxu0 0.0
        %1851 = vmatpush1.msra.mxu0 0.0
        %1852 = vmatprep.subr.mxu0 0.0
        %1853 = vmatpush1.msra.mxu0 0.0
        %1854 = vmatprep.subr.mxu0 0.0
        %1855 = vmatpush1.msra.mxu0 0.0
        %1856 = vmatprep.subr.mxu0 0.0
        %1857 = vmatpush1.msra.mxu0 0.0
        %1858 = vmatprep.subr.mxu0 0.0
        %1859 = vmatpush1.msra.mxu0 0.0
        %1860 = vmatprep.mubr.f32.mxu0 0.0
        %1861 = vmatmul.mubr.f32.gmra.mrb[0].mxu0 %v1794
        %v1862 = vpop.f32.mrb[0].mxu0
        %v1863 = vadd.f32 0.0, %v1862
        %v1864 = vpop.f32.mrb[0].mxu0
        %1865 = vdwg.mxu0
        %v1867 = vsel %vm1444, %v1790, 0
        %1869 = vmatprep.subr.mxu0 0.0
        %1870 = vmatpush1.msra.mxu0 %v1301
        %1871 = vmatprep.subr.mxu0 0.0
        %1872 = vmatpush1.msra.mxu0 0.0
        %1873 = vmatprep.subr.mxu0 0.0
        %1874 = vmatpush1.msra.mxu0 0.0
        %1875 = vmatprep.subr.mxu0 0.0
        %1876 = vmatpush1.msra.mxu0 0.0
        %1877 = vmatprep.subr.mxu0 0.0
        %1878 = vmatpush1.msra.mxu0 0.0
        %1879 = vmatprep.subr.mxu0 0.0
        %1880 = vmatpush1.msra.mxu0 0.0
        %1881 = vmatprep.subr.mxu0 0.0
        %1882 = vmatpush1.msra.mxu0 0.0
        %1883 = vmatprep.subr.mxu0 0.0
        %1884 = vmatpush1.msra.mxu0 0.0
        %1885 = vmatprep.subr.mxu0 0.0
        %1886 = vmatpush1.msra.mxu0 0.0
        %1887 = vmatprep.subr.mxu0 0.0
        %1888 = vmatpush1.msra.mxu0 0.0
        %1889 = vmatprep.subr.mxu0 0.0
        %1890 = vmatpush1.msra.mxu0 0.0
        %1891 = vmatprep.subr.mxu0 0.0
        %1892 = vmatpush1.msra.mxu0 0.0
        %1893 = vmatprep.subr.mxu0 0.0
        %1894 = vmatpush1.msra.mxu0 0.0
        %1895 = vmatprep.subr.mxu0 0.0
        %1896 = vmatpush1.msra.mxu0 0.0
        %1897 = vmatprep.subr.mxu0 0.0
        %1898 = vmatpush1.msra.mxu0 0.0
        %1899 = vmatprep.subr.mxu0 0.0
        %1900 = vmatpush1.msra.mxu0 0.0
        %1901 = vmatprep.subr.mxu0 0.0
        %1902 = vmatpush1.msra.mxu0 0.0
        %1903 = vmatprep.subr.mxu0 0.0
        %1904 = vmatpush1.msra.mxu0 0.0
        %1905 = vmatprep.subr.mxu0 0.0
        %1906 = vmatpush1.msra.mxu0 0.0
        %1907 = vmatprep.subr.mxu0 0.0
        %1908 = vmatpush1.msra.mxu0 0.0
        %1909 = vmatprep.subr.mxu0 0.0
        %1910 = vmatpush1.msra.mxu0 0.0
        %1911 = vmatprep.subr.mxu0 0.0
        %1912 = vmatpush1.msra.mxu0 0.0
        %1913 = vmatprep.subr.mxu0 0.0
        %1914 = vmatpush1.msra.mxu0 0.0
        %1915 = vmatprep.subr.mxu0 0.0
        %1916 = vmatpush1.msra.mxu0 0.0
        %1917 = vmatprep.subr.mxu0 0.0
        %1918 = vmatpush1.msra.mxu0 0.0
        %1919 = vmatprep.subr.mxu0 0.0
        %1920 = vmatpush1.msra.mxu0 0.0
        %1921 = vmatprep.subr.mxu0 0.0
        %1922 = vmatpush1.msra.mxu0 0.0
        %1923 = vmatprep.subr.mxu0 0.0
        %1924 = vmatpush1.msra.mxu0 0.0
        %1925 = vmatprep.subr.mxu0 0.0
        %1926 = vmatpush1.msra.mxu0 0.0
        %1927 = vmatprep.subr.mxu0 0.0
        %1928 = vmatpush1.msra.mxu0 0.0
        %1929 = vmatprep.subr.mxu0 0.0
        %1930 = vmatpush1.msra.mxu0 0.0
        %1931 = vmatprep.subr.mxu0 0.0
        %1932 = vmatpush1.msra.mxu0 0.0
        %1933 = vmatprep.mubr.f32.mxu0 0.0
        %1934 = vmatmul.mubr.f32.gmra.mrb[0].mxu0 %v1867
        %v1935 = vpop.f32.mrb[0].mxu0
        %v1936 = vadd.f32 0.0, %v1935
        %v1937 = vpop.f32.mrb[0].mxu0
        %1938 = vdwg.mxu0
        %v1940 = vsel %vm1444, %v1791, 0
        %1942 = vmatprep.subr.mxu0 0.0
        %1943 = vmatpush1.msra.mxu0 %v1371
        %1944 = vmatprep.subr.mxu0 0.0
        %1945 = vmatpush1.msra.mxu0 0.0
        %1946 = vmatprep.subr.mxu0 0.0
        %1947 = vmatpush1.msra.mxu0 0.0
        %1948 = vmatprep.subr.mxu0 0.0
        %1949 = vmatpush1.msra.mxu0 0.0
        %1950 = vmatprep.subr.mxu0 0.0
        %1951 = vmatpush1.msra.mxu0 0.0
        %1952 = vmatprep.subr.mxu0 0.0
        %1953 = vmatpush1.msra.mxu0 0.0
        %1954 = vmatprep.subr.mxu0 0.0
        %1955 = vmatpush1.msra.mxu0 0.0
        %1956 = vmatprep.subr.mxu0 0.0
        %1957 = vmatpush1.msra.mxu0 0.0
        %1958 = vmatprep.subr.mxu0 0.0
        %1959 = vmatpush1.msra.mxu0 0.0
        %1960 = vmatprep.subr.mxu0 0.0
        %1961 = vmatpush1.msra.mxu0 0.0
        %1962 = vmatprep.subr.mxu0 0.0
        %1963 = vmatpush1.msra.mxu0 0.0
        %1964 = vmatprep.subr.mxu0 0.0
        %1965 = vmatpush1.msra.mxu0 0.0
        %1966 = vmatprep.subr.mxu0 0.0
        %1967 = vmatpush1.msra.mxu0 0.0
        %1968 = vmatprep.subr.mxu0 0.0
        %1969 = vmatpush1.msra.mxu0 0.0
        %1970 = vmatprep.subr.mxu0 0.0
        %1971 = vmatpush1.msra.mxu0 0.0
        %1972 = vmatprep.subr.mxu0 0.0
        %1973 = vmatpush1.msra.mxu0 0.0
        %1974 = vmatprep.subr.mxu0 0.0
        %1975 = vmatpush1.msra.mxu0 0.0
        %1976 = vmatprep.subr.mxu0 0.0
        %1977 = vmatpush1.msra.mxu0 0.0
        %1978 = vmatprep.subr.mxu0 0.0
        %1979 = vmatpush1.msra.mxu0 0.0
        %1980 = vmatprep.subr.mxu0 0.0
        %1981 = vmatpush1.msra.mxu0 0.0
        %1982 = vmatprep.subr.mxu0 0.0
        %1983 = vmatpush1.msra.mxu0 0.0
        %1984 = vmatprep.subr.mxu0 0.0
        %1985 = vmatpush1.msra.mxu0 0.0
        %1986 = vmatprep.subr.mxu0 0.0
        %1987 = vmatpush1.msra.mxu0 0.0
        %1988 = vmatprep.subr.mxu0 0.0
        %1989 = vmatpush1.msra.mxu0 0.0
        %1990 = vmatprep.subr.mxu0 0.0
        %1991 = vmatpush1.msra.mxu0 0.0
        %1992 = vmatprep.subr.mxu0 0.0
        %1993 = vmatpush1.msra.mxu0 0.0
        %1994 = vmatprep.subr.mxu0 0.0
        %1995 = vmatpush1.msra.mxu0 0.0
        %1996 = vmatprep.subr.mxu0 0.0
        %1997 = vmatpush1.msra.mxu0 0.0
        %1998 = vmatprep.subr.mxu0 0.0
        %1999 = vmatpush1.msra.mxu0 0.0
        %2000 = vmatprep.subr.mxu0 0.0
        %2001 = vmatpush1.msra.mxu0 0.0
        %2002 = vmatprep.subr.mxu0 0.0
        %2003 = vmatpush1.msra.mxu0 0.0
        %2004 = vmatprep.subr.mxu0 0.0
        %2005 = vmatpush1.msra.mxu0 0.0
        %2006 = vmatprep.mubr.f32.mxu0 0.0
        %2007 = vmatmul.mubr.f32.gmra.mrb[0].mxu0 %v1940
        %v2008 = vpop.f32.mrb[0].mxu0
        %v2009 = vadd.f32 0.0, %v2008
        %v2010 = vpop.f32.mrb[0].mxu0
        %2011 = vdwg.mxu0
        %v2013 = vsel %vm1444, %v1792, 0
        %2015 = vmatprep.subr.mxu0 0.0
        %2016 = vmatpush1.msra.mxu0 %v1441
        %2017 = vmatprep.subr.mxu0 0.0
        %2018 = vmatpush1.msra.mxu0 0.0
        %2019 = vmatprep.subr.mxu0 0.0
        %2020 = vmatpush1.msra.mxu0 0.0
        %2021 = vmatprep.subr.mxu0 0.0
        %2022 = vmatpush1.msra.mxu0 0.0
        %2023 = vmatprep.subr.mxu0 0.0
        %2024 = vmatpush1.msra.mxu0 0.0
        %2025 = vmatprep.subr.mxu0 0.0
        %2026 = vmatpush1.msra.mxu0 0.0
        %2027 = vmatprep.subr.mxu0 0.0
        %2028 = vmatpush1.msra.mxu0 0.0
        %2029 = vmatprep.subr.mxu0 0.0
        %2030 = vmatpush1.msra.mxu0 0.0
        %2031 = vmatprep.subr.mxu0 0.0
        %2032 = vmatpush1.msra.mxu0 0.0
        %2033 = vmatprep.subr.mxu0 0.0
        %2034 = vmatpush1.msra.mxu0 0.0
        %2035 = vmatprep.subr.mxu0 0.0
        %2036 = vmatpush1.msra.mxu0 0.0
        %2037 = vmatprep.subr.mxu0 0.0
        %2038 = vmatpush1.msra.mxu0 0.0
        %2039 = vmatprep.subr.mxu0 0.0
        %2040 = vmatpush1.msra.mxu0 0.0
        %2041 = vmatprep.subr.mxu0 0.0
        %2042 = vmatpush1.msra.mxu0 0.0
        %2043 = vmatprep.subr.mxu0 0.0
        %2044 = vmatpush1.msra.mxu0 0.0
        %2045 = vmatprep.subr.mxu0 0.0
        %2046 = vmatpush1.msra.mxu0 0.0
        %2047 = vmatprep.subr.mxu0 0.0
        %2048 = vmatpush1.msra.mxu0 0.0
        %2049 = vmatprep.subr.mxu0 0.0
        %2050 = vmatpush1.msra.mxu0 0.0
        %2051 = vmatprep.subr.mxu0 0.0
        %2052 = vmatpush1.msra.mxu0 0.0
        %2053 = vmatprep.subr.mxu0 0.0
        %2054 = vmatpush1.msra.mxu0 0.0
        %2055 = vmatprep.subr.mxu0 0.0
        %2056 = vmatpush1.msra.mxu0 0.0
        %2057 = vmatprep.subr.mxu0 0.0
        %2058 = vmatpush1.msra.mxu0 0.0
        %2059 = vmatprep.subr.mxu0 0.0
        %2060 = vmatpush1.msra.mxu0 0.0
        %2061 = vmatprep.subr.mxu0 0.0
        %2062 = vmatpush1.msra.mxu0 0.0
        %2063 = vmatprep.subr.mxu0 0.0
        %2064 = vmatpush1.msra.mxu0 0.0
        %2065 = vmatprep.subr.mxu0 0.0
        %2066 = vmatpush1.msra.mxu0 0.0
        %2067 = vmatprep.subr.mxu0 0.0
        %2068 = vmatpush1.msra.mxu0 0.0
        %2069 = vmatprep.subr.mxu0 0.0
        %2070 = vmatpush1.msra.mxu0 0.0
        %2071 = vmatprep.subr.mxu0 0.0
        %2072 = vmatpush1.msra.mxu0 0.0
        %2073 = vmatprep.subr.mxu0 0.0
        %2074 = vmatpush1.msra.mxu0 0.0
        %2075 = vmatprep.subr.mxu0 0.0
        %2076 = vmatpush1.msra.mxu0 0.0
        %2077 = vmatprep.subr.mxu0 0.0
        %2078 = vmatpush1.msra.mxu0 0.0
        %2079 = vmatprep.mubr.f32.mxu0 0.0
        %2080 = vmatmul.mubr.f32.gmra.mrb[0].mxu0 %v2013
        %v2081 = vpop.f32.mrb[0].mxu0
        %v2082 = vadd.f32 0.0, %v2081
        %v2083 = vpop.f32.mrb[0].mxu0
        %2084 = vdwg.mxu0
        %v2086 = vsel %vm1444, %v1863, 0
        %v2089 = vsel %vm1444, %v581, 0
        %v2092 = vsel %vm1444, %v582, 0
        %v2095 = vsel %vm1444, %v583, 0
        %v2098 = vsel %vm1444, %v584, 0
        %2100 = vmatprep.subr.mxu0 0.0
        %2101 = vmatpush1.xpose.msra.mxu0 %v2089
        %2102 = vmatprep.subr.mxu0 0.0
        %2103 = vmatpush1.xpose.msra.mxu0 %v2092
        %2104 = vmatprep.subr.mxu0 0.0
        %2105 = vmatpush1.xpose.msra.mxu0 %v2095
        %2106 = vmatprep.subr.mxu0 0.0
        %2107 = vmatpush1.xpose.msra.mxu0 %v2098
        %2108 = vmatprep.subr.mxu0 0.0
        %2109 = vmatpush1.xpose.msra.mxu0 0.0
        %2110 = vmatprep.subr.mxu0 0.0
        %2111 = vmatpush1.xpose.msra.mxu0 0.0
        %2112 = vmatprep.subr.mxu0 0.0
        %2113 = vmatpush1.xpose.msra.mxu0 0.0
        %2114 = vmatprep.subr.mxu0 0.0
        %2115 = vmatpush1.xpose.msra.mxu0 0.0
        %2116 = vmatprep.subr.mxu0 0.0
        %2117 = vmatpush1.xpose.msra.mxu0 0.0
        %2118 = vmatprep.subr.mxu0 0.0
        %2119 = vmatpush1.xpose.msra.mxu0 0.0
        %2120 = vmatprep.subr.mxu0 0.0
        %2121 = vmatpush1.xpose.msra.mxu0 0.0
        %2122 = vmatprep.subr.mxu0 0.0
        %2123 = vmatpush1.xpose.msra.mxu0 0.0
        %2124 = vmatprep.subr.mxu0 0.0
        %2125 = vmatpush1.xpose.msra.mxu0 0.0
        %2126 = vmatprep.subr.mxu0 0.0
        %2127 = vmatpush1.xpose.msra.mxu0 0.0
        %2128 = vmatprep.subr.mxu0 0.0
        %2129 = vmatpush1.xpose.msra.mxu0 0.0
        %2130 = vmatprep.subr.mxu0 0.0
        %2131 = vmatpush1.xpose.msra.mxu0 0.0
        %2132 = vmatprep.subr.mxu0 0.0
        %2133 = vmatpush1.xpose.msra.mxu0 0.0
        %2134 = vmatprep.subr.mxu0 0.0
        %2135 = vmatpush1.xpose.msra.mxu0 0.0
        %2136 = vmatprep.subr.mxu0 0.0
        %2137 = vmatpush1.xpose.msra.mxu0 0.0
        %2138 = vmatprep.subr.mxu0 0.0
        %2139 = vmatpush1.xpose.msra.mxu0 0.0
        %2140 = vmatprep.subr.mxu0 0.0
        %2141 = vmatpush1.xpose.msra.mxu0 0.0
        %2142 = vmatprep.subr.mxu0 0.0
        %2143 = vmatpush1.xpose.msra.mxu0 0.0
        %2144 = vmatprep.subr.mxu0 0.0
        %2145 = vmatpush1.xpose.msra.mxu0 0.0
        %2146 = vmatprep.subr.mxu0 0.0
        %2147 = vmatpush1.xpose.msra.mxu0 0.0
        %2148 = vmatprep.subr.mxu0 0.0
        %2149 = vmatpush1.xpose.msra.mxu0 0.0
        %2150 = vmatprep.subr.mxu0 0.0
        %2151 = vmatpush1.xpose.msra.mxu0 0.0
        %2152 = vmatprep.subr.mxu0 0.0
        %2153 = vmatpush1.xpose.msra.mxu0 0.0
        %2154 = vmatprep.subr.mxu0 0.0
        %2155 = vmatpush1.xpose.msra.mxu0 0.0
        %2156 = vmatprep.subr.mxu0 0.0
        %2157 = vmatpush1.xpose.msra.mxu0 0.0
        %2158 = vmatprep.subr.mxu0 0.0
        %2159 = vmatpush1.xpose.msra.mxu0 0.0
        %2160 = vmatprep.subr.mxu0 0.0
        %2161 = vmatpush1.xpose.msra.mxu0 0.0
        %2162 = vmatprep.subr.mxu0 0.0
        %2163 = vmatpush1.xpose.msra.mxu0 0.0
        %2164 = vmatprep.mubr.f32.mxu0 0.0
        %2165 = vmatmul.mubr.f32.gmra.mrb[0].mxu0 %v2086
        %v2166 = vpop.f32.mrb[0].mxu0
        %v2167 = vadd.f32 0.0, %v2166
        %v2168 = vpop.f32.mrb[0].mxu0
        %2169 = vdwg.mxu0
        %v2171 = vsel %vm1444, %v1936, 0
        %v2174 = vsel %vm1444, %v585, 0
        %v2177 = vsel %vm1444, %v586, 0
        %v2180 = vsel %vm1444, %v587, 0
        %v2183 = vsel %vm1444, %v588, 0
        %2185 = vmatprep.subr.mxu0 0.0
        %2186 = vmatpush1.xpose.msra.mxu0 %v2174
        %2187 = vmatprep.subr.mxu0 0.0
        %2188 = vmatpush1.xpose.msra.mxu0 %v2177
        %2189 = vmatprep.subr.mxu0 0.0
        %2190 = vmatpush1.xpose.msra.mxu0 %v2180
        %2191 = vmatprep.subr.mxu0 0.0
        %2192 = vmatpush1.xpose.msra.mxu0 %v2183
        %2193 = vmatprep.subr.mxu0 0.0
        %2194 = vmatpush1.xpose.msra.mxu0 0.0
        %2195 = vmatprep.subr.mxu0 0.0
        %2196 = vmatpush1.xpose.msra.mxu0 0.0
        %2197 = vmatprep.subr.mxu0 0.0
        %2198 = vmatpush1.xpose.msra.mxu0 0.0
        %2199 = vmatprep.subr.mxu0 0.0
        %2200 = vmatpush1.xpose.msra.mxu0 0.0
        %2201 = vmatprep.subr.mxu0 0.0
        %2202 = vmatpush1.xpose.msra.mxu0 0.0
        %2203 = vmatprep.subr.mxu0 0.0
        %2204 = vmatpush1.xpose.msra.mxu0 0.0
        %2205 = vmatprep.subr.mxu0 0.0
        %2206 = vmatpush1.xpose.msra.mxu0 0.0
        %2207 = vmatprep.subr.mxu0 0.0
        %2208 = vmatpush1.xpose.msra.mxu0 0.0
        %2209 = vmatprep.subr.mxu0 0.0
        %2210 = vmatpush1.xpose.msra.mxu0 0.0
        %2211 = vmatprep.subr.mxu0 0.0
        %2212 = vmatpush1.xpose.msra.mxu0 0.0
        %2213 = vmatprep.subr.mxu0 0.0
        %2214 = vmatpush1.xpose.msra.mxu0 0.0
        %2215 = vmatprep.subr.mxu0 0.0
        %2216 = vmatpush1.xpose.msra.mxu0 0.0
        %2217 = vmatprep.subr.mxu0 0.0
        %2218 = vmatpush1.xpose.msra.mxu0 0.0
        %2219 = vmatprep.subr.mxu0 0.0
        %2220 = vmatpush1.xpose.msra.mxu0 0.0
        %2221 = vmatprep.subr.mxu0 0.0
        %2222 = vmatpush1.xpose.msra.mxu0 0.0
        %2223 = vmatprep.subr.mxu0 0.0
        %2224 = vmatpush1.xpose.msra.mxu0 0.0
        %2225 = vmatprep.subr.mxu0 0.0
        %2226 = vmatpush1.xpose.msra.mxu0 0.0
        %2227 = vmatprep.subr.mxu0 0.0
        %2228 = vmatpush1.xpose.msra.mxu0 0.0
        %2229 = vmatprep.subr.mxu0 0.0
        %2230 = vmatpush1.xpose.msra.mxu0 0.0
        %2231 = vmatprep.subr.mxu0 0.0
        %2232 = vmatpush1.xpose.msra.mxu0 0.0
        %2233 = vmatprep.subr.mxu0 0.0
        %2234 = vmatpush1.xpose.msra.mxu0 0.0
        %2235 = vmatprep.subr.mxu0 0.0
        %2236 = vmatpush1.xpose.msra.mxu0 0.0
        %2237 = vmatprep.subr.mxu0 0.0
        %2238 = vmatpush1.xpose.msra.mxu0 0.0
        %2239 = vmatprep.subr.mxu0 0.0
        %2240 = vmatpush1.xpose.msra.mxu0 0.0
        %2241 = vmatprep.subr.mxu0 0.0
        %2242 = vmatpush1.xpose.msra.mxu0 0.0
        %2243 = vmatprep.subr.mxu0 0.0
        %2244 = vmatpush1.xpose.msra.mxu0 0.0
        %2245 = vmatprep.subr.mxu0 0.0
        %2246 = vmatpush1.xpose.msra.mxu0 0.0
        %2247 = vmatprep.subr.mxu0 0.0
        %2248 = vmatpush1.xpose.msra.mxu0 0.0
        %2249 = vmatprep.mubr.f32.mxu0 0.0
        %2250 = vmatmul.mubr.f32.gmra.mrb[0].mxu0 %v2171
        %v2251 = vpop.f32.mrb[0].mxu0
        %v2252 = vadd.f32 0.0, %v2251
        %v2253 = vpop.f32.mrb[0].mxu0
        %2254 = vdwg.mxu0
        %v2256 = vsel %vm1444, %v2009, 0
        %v2259 = vsel %vm1444, %v589, 0
        %v2262 = vsel %vm1444, %v590, 0
        %v2265 = vsel %vm1444, %v591, 0
        %v2268 = vsel %vm1444, %v592, 0
        %2270 = vmatprep.subr.mxu0 0.0
        %2271 = vmatpush1.xpose.msra.mxu0 %v2259
        %2272 = vmatprep.subr.mxu0 0.0
        %2273 = vmatpush1.xpose.msra.mxu0 %v2262
        %2274 = vmatprep.subr.mxu0 0.0
        %2275 = vmatpush1.xpose.msra.mxu0 %v2265
        %2276 = vmatprep.subr.mxu0 0.0
        %2277 = vmatpush1.xpose.msra.mxu0 %v2268
        %2278 = vmatprep.subr.mxu0 0.0
        %2279 = vmatpush1.xpose.msra.mxu0 0.0
        %2280 = vmatprep.subr.mxu0 0.0
        %2281 = vmatpush1.xpose.msra.mxu0 0.0
        %2282 = vmatprep.subr.mxu0 0.0
        %2283 = vmatpush1.xpose.msra.mxu0 0.0
        %2284 = vmatprep.subr.mxu0 0.0
        %2285 = vmatpush1.xpose.msra.mxu0 0.0
        %2286 = vmatprep.subr.mxu0 0.0
        %2287 = vmatpush1.xpose.msra.mxu0 0.0
        %2288 = vmatprep.subr.mxu0 0.0
        %2289 = vmatpush1.xpose.msra.mxu0 0.0
        %2290 = vmatprep.subr.mxu0 0.0
        %2291 = vmatpush1.xpose.msra.mxu0 0.0
        %2292 = vmatprep.subr.mxu0 0.0
        %2293 = vmatpush1.xpose.msra.mxu0 0.0
        %2294 = vmatprep.subr.mxu0 0.0
        %2295 = vmatpush1.xpose.msra.mxu0 0.0
        %2296 = vmatprep.subr.mxu0 0.0
        %2297 = vmatpush1.xpose.msra.mxu0 0.0
        %2298 = vmatprep.subr.mxu0 0.0
        %2299 = vmatpush1.xpose.msra.mxu0 0.0
        %2300 = vmatprep.subr.mxu0 0.0
        %2301 = vmatpush1.xpose.msra.mxu0 0.0
        %2302 = vmatprep.subr.mxu0 0.0
        %2303 = vmatpush1.xpose.msra.mxu0 0.0
        %2304 = vmatprep.subr.mxu0 0.0
        %2305 = vmatpush1.xpose.msra.mxu0 0.0
        %2306 = vmatprep.subr.mxu0 0.0
        %2307 = vmatpush1.xpose.msra.mxu0 0.0
        %2308 = vmatprep.subr.mxu0 0.0
        %2309 = vmatpush1.xpose.msra.mxu0 0.0
        %2310 = vmatprep.subr.mxu0 0.0
        %2311 = vmatpush1.xpose.msra.mxu0 0.0
        %2312 = vmatprep.subr.mxu0 0.0
        %2313 = vmatpush1.xpose.msra.mxu0 0.0
        %2314 = vmatprep.subr.mxu0 0.0
        %2315 = vmatpush1.xpose.msra.mxu0 0.0
        %2316 = vmatprep.subr.mxu0 0.0
        %2317 = vmatpush1.xpose.msra.mxu0 0.0
        %2318 = vmatprep.subr.mxu0 0.0
        %2319 = vmatpush1.xpose.msra.mxu0 0.0
        %2320 = vmatprep.subr.mxu0 0.0
        %2321 = vmatpush1.xpose.msra.mxu0 0.0
        %2322 = vmatprep.subr.mxu0 0.0
        %2323 = vmatpush1.xpose.msra.mxu0 0.0
        %2324 = vmatprep.subr.mxu0 0.0
        %2325 = vmatpush1.xpose.msra.mxu0 0.0
        %2326 = vmatprep.subr.mxu0 0.0
        %2327 = vmatpush1.xpose.msra.mxu0 0.0
        %2328 = vmatprep.subr.mxu0 0.0
        %2329 = vmatpush1.xpose.msra.mxu0 0.0
        %2330 = vmatprep.subr.mxu0 0.0
        %2331 = vmatpush1.xpose.msra.mxu0 0.0
        %2332 = vmatprep.subr.mxu0 0.0
        %2333 = vmatpush1.xpose.msra.mxu0 0.0
        %2334 = vmatprep.mubr.f32.mxu0 0.0
        %2335 = vmatmul.mubr.f32.gmra.mrb[0].mxu0 %v2256
        %v2336 = vpop.f32.mrb[0].mxu0
        %v2337 = vadd.f32 0.0, %v2336
        %v2338 = vpop.f32.mrb[0].mxu0
        %2339 = vdwg.mxu0
        %v2341 = vsel %vm1444, %v2082, 0
        %v2344 = vsel %vm1444, %v593, 0
        %v2347 = vsel %vm1444, %v594, 0
        %v2350 = vsel %vm1444, %v595, 0
        %v2353 = vsel %vm1444, %v596, 0
        %2355 = vmatprep.subr.mxu0 0.0
        %2356 = vmatpush1.xpose.msra.mxu0 %v2344
        %2357 = vmatprep.subr.mxu0 0.0
        %2358 = vmatpush1.xpose.msra.mxu0 %v2347
        %2359 = vmatprep.subr.mxu0 0.0
        %2360 = vmatpush1.xpose.msra.mxu0 %v2350
        %2361 = vmatprep.subr.mxu0 0.0
        %2362 = vmatpush1.xpose.msra.mxu0 %v2353
        %2363 = vmatprep.subr.mxu0 0.0
        %2364 = vmatpush1.xpose.msra.mxu0 0.0
        %2365 = vmatprep.subr.mxu0 0.0
        %2366 = vmatpush1.xpose.msra.mxu0 0.0
        %2367 = vmatprep.subr.mxu0 0.0
        %2368 = vmatpush1.xpose.msra.mxu0 0.0
        %2369 = vmatprep.subr.mxu0 0.0
        %2370 = vmatpush1.xpose.msra.mxu0 0.0
        %2371 = vmatprep.subr.mxu0 0.0
        %2372 = vmatpush1.xpose.msra.mxu0 0.0
        %2373 = vmatprep.subr.mxu0 0.0
        %2374 = vmatpush1.xpose.msra.mxu0 0.0
        %2375 = vmatprep.subr.mxu0 0.0
        %2376 = vmatpush1.xpose.msra.mxu0 0.0
        %2377 = vmatprep.subr.mxu0 0.0
        %2378 = vmatpush1.xpose.msra.mxu0 0.0
        %2379 = vmatprep.subr.mxu0 0.0
        %2380 = vmatpush1.xpose.msra.mxu0 0.0
        %2381 = vmatprep.subr.mxu0 0.0
        %2382 = vmatpush1.xpose.msra.mxu0 0.0
        %2383 = vmatprep.subr.mxu0 0.0
        %2384 = vmatpush1.xpose.msra.mxu0 0.0
        %2385 = vmatprep.subr.mxu0 0.0
        %2386 = vmatpush1.xpose.msra.mxu0 0.0
        %2387 = vmatprep.subr.mxu0 0.0
        %2388 = vmatpush1.xpose.msra.mxu0 0.0
        %2389 = vmatprep.subr.mxu0 0.0
        %2390 = vmatpush1.xpose.msra.mxu0 0.0
        %2391 = vmatprep.subr.mxu0 0.0
        %2392 = vmatpush1.xpose.msra.mxu0 0.0
        %2393 = vmatprep.subr.mxu0 0.0
        %2394 = vmatpush1.xpose.msra.mxu0 0.0
        %2395 = vmatprep.subr.mxu0 0.0
        %2396 = vmatpush1.xpose.msra.mxu0 0.0
        %2397 = vmatprep.subr.mxu0 0.0
        %2398 = vmatpush1.xpose.msra.mxu0 0.0
        %2399 = vmatprep.subr.mxu0 0.0
        %2400 = vmatpush1.xpose.msra.mxu0 0.0
        %2401 = vmatprep.subr.mxu0 0.0
        %2402 = vmatpush1.xpose.msra.mxu0 0.0
        %2403 = vmatprep.subr.mxu0 0.0
        %2404 = vmatpush1.xpose.msra.mxu0 0.0
        %2405 = vmatprep.subr.mxu0 0.0
        %2406 = vmatpush1.xpose.msra.mxu0 0.0
        %2407 = vmatprep.subr.mxu0 0.0
        %2408 = vmatpush1.xpose.msra.mxu0 0.0
        %2409 = vmatprep.subr.mxu0 0.0
        %2410 = vmatpush1.xpose.msra.mxu0 0.0
        %2411 = vmatprep.subr.mxu0 0.0
        %2412 = vmatpush1.xpose.msra.mxu0 0.0
        %2413 = vmatprep.subr.mxu0 0.0
        %2414 = vmatpush1.xpose.msra.mxu0 0.0
        %2415 = vmatprep.subr.mxu0 0.0
        %2416 = vmatpush1.xpose.msra.mxu0 0.0
        %2417 = vmatprep.subr.mxu0 0.0
        %2418 = vmatpush1.xpose.msra.mxu0 0.0
        %2419 = vmatprep.mubr.f32.mxu0 0.0
        %2420 = vmatmul.mubr.f32.gmra.mrb[0].mxu0 %v2341
        %v2421 = vpop.f32.mrb[0].mxu0
        %v2422 = vadd.f32 0.0, %v2421
        %v2423 = vpop.f32.mrb[0].mxu0
        %2424 = vdwg.mxu0
        %v2425 = vsel %vm597, %v2167, 0.0
        %v2426 = vsel %vm597, %v2252, 0.0
        %v2427 = vadd.f32 %v2425, %v2426
        %v2428 = vsel %vm597, %v2337, 0.0
        %v2429 = vadd.f32 %v2427, %v2428
        %v2430 = vsel %vm597, %v2422, 0.0
        %v2431 = vadd.f32 %v2429, %v2430
        %v2432 = vadd.f32 %v531, %v2431
        %v2433 = vld [vmem:[%s427] sm:$0xff]
        %v2434 = vld [vmem:[%s427 + $0x8] sm:$0xff]
        %v2435 = vld [vmem:[%s427 + $0x10] sm:$0xff]
        %v2436 = vld [vmem:[%s427 + $0x18] sm:$0xff]
        %v2437 = vld [vmem:[%s430] sm:$0x1]
        %v2439 = vlaneseq
        %v2440 = vshrl.u32 %v2439, 7
        %v2441 = vsub.s32 0, %v2440
        %v2442 = vrot.slane %v2437, %v2441
        %v2445 = vsel %vm597, %v2432, 0
        %2447 = vmatprep.subr.mxu0 0.0
        %2448 = vmatpush1.msra.mxu0 %v2433
        %2449 = vmatprep.subr.mxu0 0.0
        %2450 = vmatpush1.msra.mxu0 %v2434
        %2451 = vmatprep.subr.mxu0 0.0
        %2452 = vmatpush1.msra.mxu0 %v2435
        %2453 = vmatprep.subr.mxu0 0.0
        %2454 = vmatpush1.msra.mxu0 %v2436
        %2455 = vmatprep.subr.mxu0 0.0
        %2456 = vmatpush1.msra.mxu0 0.0
        %2457 = vmatprep.subr.mxu0 0.0
        %2458 = vmatpush1.msra.mxu0 0.0
        %2459 = vmatprep.subr.mxu0 0.0
        %2460 = vmatpush1.msra.mxu0 0.0
        %2461 = vmatprep.subr.mxu0 0.0
        %2462 = vmatpush1.msra.mxu0 0.0
        %2463 = vmatprep.subr.mxu0 0.0
        %2464 = vmatpush1.msra.mxu0 0.0
        %2465 = vmatprep.subr.mxu0 0.0
        %2466 = vmatpush1.msra.mxu0 0.0
        %2467 = vmatprep.subr.mxu0 0.0
        %2468 = vmatpush1.msra.mxu0 0.0
        %2469 = vmatprep.subr.mxu0 0.0
        %2470 = vmatpush1.msra.mxu0 0.0
        %2471 = vmatprep.subr.mxu0 0.0
        %2472 = vmatpush1.msra.mxu0 0.0
        %2473 = vmatprep.subr.mxu0 0.0
        %2474 = vmatpush1.msra.mxu0 0.0
        %2475 = vmatprep.subr.mxu0 0.0
        %2476 = vmatpush1.msra.mxu0 0.0
        %2477 = vmatprep.subr.mxu0 0.0
        %2478 = vmatpush1.msra.mxu0 0.0
        %2479 = vmatprep.subr.mxu0 0.0
        %2480 = vmatpush1.msra.mxu0 0.0
        %2481 = vmatprep.subr.mxu0 0.0
        %2482 = vmatpush1.msra.mxu0 0.0
        %2483 = vmatprep.subr.mxu0 0.0
        %2484 = vmatpush1.msra.mxu0 0.0
        %2485 = vmatprep.subr.mxu0 0.0
        %2486 = vmatpush1.msra.mxu0 0.0
        %2487 = vmatprep.subr.mxu0 0.0
        %2488 = vmatpush1.msra.mxu0 0.0
        %2489 = vmatprep.subr.mxu0 0.0
        %2490 = vmatpush1.msra.mxu0 0.0
        %2491 = vmatprep.subr.mxu0 0.0
        %2492 = vmatpush1.msra.mxu0 0.0
        %2493 = vmatprep.subr.mxu0 0.0
        %2494 = vmatpush1.msra.mxu0 0.0
        %2495 = vmatprep.subr.mxu0 0.0
        %2496 = vmatpush1.msra.mxu0 0.0
        %2497 = vmatprep.subr.mxu0 0.0
        %2498 = vmatpush1.msra.mxu0 0.0
        %2499 = vmatprep.subr.mxu0 0.0
        %2500 = vmatpush1.msra.mxu0 0.0
        %2501 = vmatprep.subr.mxu0 0.0
        %2502 = vmatpush1.msra.mxu0 0.0
        %2503 = vmatprep.subr.mxu0 0.0
        %2504 = vmatpush1.msra.mxu0 0.0
        %2505 = vmatprep.subr.mxu0 0.0
        %2506 = vmatpush1.msra.mxu0 0.0
        %2507 = vmatprep.subr.mxu0 0.0
        %2508 = vmatpush1.msra.mxu0 0.0
        %2509 = vmatprep.subr.mxu0 0.0
        %2510 = vmatpush1.msra.mxu0 0.0
        %2511 = vmatprep.mubr.f32.mxu0 0.0
        %2512 = vmatmul.mubr.f32.gmra.mrb[0].mxu0 %v2445
        %v2513 = vpop.f32.mrb[0].mxu0
        %v2514 = vadd.f32 %v2442, %v2513
        %v2515 = vpop.f32.mrb[0].mxu0
        %2516 = vdwg.mxu0
        %v2517 = vmax.f32 %v2514, 0.0
        %v2518 = vld [vmem:[%s435] sm:$0xff]
        %v2519 = vld [vmem:[%s435 + $0x8] sm:$0xff]
        %v2520 = vld [vmem:[%s435 + $0x10] sm:$0xff]
        %v2521 = vld [vmem:[%s435 + $0x18] sm:$0xff]
        %v2522 = vld [vmem:[%s435 + $0x20] sm:$0xff]
        %v2523 = vld [vmem:[%s435 + $0x28] sm:$0xff]
        %v2524 = vld [vmem:[%s435 + $0x30] sm:$0xff]
        %v2525 = vld [vmem:[%s435 + $0x38] sm:$0xff]
        %vm2526 = vcmask 523264
        %v2528 = vsel %vm2526, %v2517, 0
        %2530 = vmatprep.subr.mxu0 0.0
        %2531 = vmatpush1.msra.mxu0 %v2518
        %2532 = vmatprep.subr.mxu0 0.0
        %2533 = vmatpush1.msra.mxu0 %v2519
        %2534 = vmatprep.subr.mxu0 0.0
        %2535 = vmatpush1.msra.mxu0 %v2520
        %2536 = vmatprep.subr.mxu0 0.0
        %2537 = vmatpush1.msra.mxu0 %v2521
        %2538 = vmatprep.subr.mxu0 0.0
        %2539 = vmatpush1.msra.mxu0 %v2522
        %2540 = vmatprep.subr.mxu0 0.0
        %2541 = vmatpush1.msra.mxu0 %v2523
        %2542 = vmatprep.subr.mxu0 0.0
        %2543 = vmatpush1.msra.mxu0 %v2524
        %2544 = vmatprep.subr.mxu0 0.0
        %2545 = vmatpush1.msra.mxu0 %v2525
        %2546 = vmatprep.subr.mxu0 0.0
        %2547 = vmatpush1.msra.mxu0 0.0
        %2548 = vmatprep.subr.mxu0 0.0
        %2549 = vmatpush1.msra.mxu0 0.0
        %2550 = vmatprep.subr.mxu0 0.0
        %2551 = vmatpush1.msra.mxu0 0.0
        %2552 = vmatprep.subr.mxu0 0.0
        %2553 = vmatpush1.msra.mxu0 0.0
        %2554 = vmatprep.subr.mxu0 0.0
        %2555 = vmatpush1.msra.mxu0 0.0
        %2556 = vmatprep.subr.mxu0 0.0
        %2557 = vmatpush1.msra.mxu0 0.0
        %2558 = vmatprep.subr.mxu0 0.0
        %2559 = vmatpush1.msra.mxu0 0.0
        %2560 = vmatprep.subr.mxu0 0.0
        %2561 = vmatpush1.msra.mxu0 0.0
        %2562 = vmatprep.subr.mxu0 0.0
        %2563 = vmatpush1.msra.mxu0 0.0
        %2564 = vmatprep.subr.mxu0 0.0
        %2565 = vmatpush1.msra.mxu0 0.0
        %2566 = vmatprep.subr.mxu0 0.0
        %2567 = vmatpush1.msra.mxu0 0.0
        %2568 = vmatprep.subr.mxu0 0.0
        %2569 = vmatpush1.msra.mxu0 0.0
        %2570 = vmatprep.subr.mxu0 0.0
        %2571 = vmatpush1.msra.mxu0 0.0
        %2572 = vmatprep.subr.mxu0 0.0
        %2573 = vmatpush1.msra.mxu0 0.0
        %2574 = vmatprep.subr.mxu0 0.0
        %2575 = vmatpush1.msra.mxu0 0.0
        %2576 = vmatprep.subr.mxu0 0.0
        %2577 = vmatpush1.msra.mxu0 0.0
        %2578 = vmatprep.subr.mxu0 0.0
        %2579 = vmatpush1.msra.mxu0 0.0
        %2580 = vmatprep.subr.mxu0 0.0
        %2581 = vmatpush1.msra.mxu0 0.0
        %2582 = vmatprep.subr.mxu0 0.0
        %2583 = vmatpush1.msra.mxu0 0.0
        %2584 = vmatprep.subr.mxu0 0.0
        %2585 = vmatpush1.msra.mxu0 0.0
        %2586 = vmatprep.subr.mxu0 0.0
        %2587 = vmatpush1.msra.mxu0 0.0
        %2588 = vmatprep.subr.mxu0 0.0
        %2589 = vmatpush1.msra.mxu0 0.0
        %2590 = vmatprep.subr.mxu0 0.0
        %2591 = vmatpush1.msra.mxu0 0.0
        %2592 = vmatprep.subr.mxu0 0.0
        %2593 = vmatpush1.msra.mxu0 0.0
        %2594 = vmatprep.mubr.f32.mxu0 0.0
        %2595 = vmatmul.mubr.f32.gmra.mrb[0].mxu0 %v2528
        %v2596 = vpop.f32.mrb[0].mxu0
        %v2597 = vadd.f32 0.0, %v2596
        %v2598 = vpop.f32.mrb[0].mxu0
        %2599 = vdwg.mxu0
        %v2600 = vadd.f32 %v2432, %v2597
        %v2601 = vld [vmem:[%s438] sm:$0x1]
        %v2603 = vlaneseq
        %v2604 = vshrl.u32 %v2603, 7
        %v2605 = vsub.s32 0, %v2604
        %v2606 = vrot.slane %v2601, %v2605
        %v2608 = vadd.f32 %v2600, %v2606
        %2609 = vst.msk [vmem:[#allocation2] sm:$0xff] %vm597, %v2608
        %p2610 = scmp.eq.s32.totalorder %s24, 2
        // Predicated region
        $region65: #{tpu_custom_call.1} parent=59 // pred_check
          %p2611 = pneg %p2610
        $region66: #{tpu_custom_call.1} parent=59 // pred_check_branch
          %2613 = sbr.rel (%p2611) target = $region68
        $region67: #{tpu_custom_call.1} parent=59 // pred_region
          %v2614 = vld [vmem:[%s4] sm:$0xff]
          %v2615 = vld [vmem:[%s4 + $0x8] sm:$0xff]
          %v2616 = vld [vmem:[%s4 + $0x10] sm:$0xff]
          %v2617 = vld [vmem:[%s4 + $0x18] sm:$0xff]
          %v2618 = vmul.f32 %v2608, %v2608
          %v2619 = vsel %vm597, %v2618, 0.0
          %2620 = vadd.xlane.f32.xlu0 %v2619
          %v2621 = vpop.xlane.xlu0 %2620
          %v2622 = vmul.f32 %v2614, %v2614
          %v2623 = vmul.f32 %v2615, %v2615
          %v2624 = vmul.f32 %v2616, %v2616
          %v2625 = vmul.f32 %v2617, %v2617
          %vm2626 = vcmask 31744
          %v2627 = vsel %vm2626, %v2622, 0.0
          %v2628 = vsel %vm2626, %v2623, 0.0
          %v2629 = vadd.f32 %v2627, %v2628
          %v2630 = vsel %vm2626, %v2624, 0.0
          %v2631 = vadd.f32 %v2629, %v2630
          %v2632 = vsel %vm2626, %v2625, 0.0
          %v2633 = vadd.f32 %v2631, %v2632
          %v2634 = vrot.slane %v2633, 4
          %v2635 = vadd.f32 %v2633, %v2634
          %v2636 = vrot.slane %v2635, 2
          %v2637 = vadd.f32 %v2635, %v2636
          %v2638 = vrot.slane %v2637, 1
          %v2639 = vadd.f32 %v2637, %v2638
          %v2641 = vsel %vm597, %v2608, 0
          %2643 = vmatprep.subr.mxu0 0.0
          %2644 = vmatpush1.msra.mxu0 %v2614
          %2645 = vmatprep.subr.mxu0 0.0
          %2646 = vmatpush1.msra.mxu0 %v2615
          %2647 = vmatprep.subr.mxu0 0.0
          %2648 = vmatpush1.msra.mxu0 %v2616
          %2649 = vmatprep.subr.mxu0 0.0
          %2650 = vmatpush1.msra.mxu0 %v2617
          %2651 = vmatprep.subr.mxu0 0.0
          %2652 = vmatpush1.msra.mxu0 0.0
          %2653 = vmatprep.subr.mxu0 0.0
          %2654 = vmatpush1.msra.mxu0 0.0
          %2655 = vmatprep.subr.mxu0 0.0
          %2656 = vmatpush1.msra.mxu0 0.0
          %2657 = vmatprep.subr.mxu0 0.0
          %2658 = vmatpush1.msra.mxu0 0.0
          %2659 = vmatprep.subr.mxu0 0.0
          %2660 = vmatpush1.msra.mxu0 0.0
          %2661 = vmatprep.subr.mxu0 0.0
          %2662 = vmatpush1.msra.mxu0 0.0
          %2663 = vmatprep.subr.mxu0 0.0
          %2664 = vmatpush1.msra.mxu0 0.0
          %2665 = vmatprep.subr.mxu0 0.0
          %2666 = vmatpush1.msra.mxu0 0.0
          %2667 = vmatprep.subr.mxu0 0.0
          %2668 = vmatpush1.msra.mxu0 0.0
          %2669 = vmatprep.subr.mxu0 0.0
          %2670 = vmatpush1.msra.mxu0 0.0
          %2671 = vmatprep.subr.mxu0 0.0
          %2672 = vmatpush1.msra.mxu0 0.0
          %2673 = vmatprep.subr.mxu0 0.0
          %2674 = vmatpush1.msra.mxu0 0.0
          %2675 = vmatprep.subr.mxu0 0.0
          %2676 = vmatpush1.msra.mxu0 0.0
          %2677 = vmatprep.subr.mxu0 0.0
          %2678 = vmatpush1.msra.mxu0 0.0
          %2679 = vmatprep.subr.mxu0 0.0
          %2680 = vmatpush1.msra.mxu0 0.0
          %2681 = vmatprep.subr.mxu0 0.0
          %2682 = vmatpush1.msra.mxu0 0.0
          %2683 = vmatprep.subr.mxu0 0.0
          %2684 = vmatpush1.msra.mxu0 0.0
          %2685 = vmatprep.subr.mxu0 0.0
          %2686 = vmatpush1.msra.mxu0 0.0
          %2687 = vmatprep.subr.mxu0 0.0
          %2688 = vmatpush1.msra.mxu0 0.0
          %2689 = vmatprep.subr.mxu0 0.0
          %2690 = vmatpush1.msra.mxu0 0.0
          %2691 = vmatprep.subr.mxu0 0.0
          %2692 = vmatpush1.msra.mxu0 0.0
          %2693 = vmatprep.subr.mxu0 0.0
          %2694 = vmatpush1.msra.mxu0 0.0
          %2695 = vmatprep.subr.mxu0 0.0
          %2696 = vmatpush1.msra.mxu0 0.0
          %2697 = vmatprep.subr.mxu0 0.0
          %2698 = vmatpush1.msra.mxu0 0.0
          %2699 = vmatprep.subr.mxu0 0.0
          %2700 = vmatpush1.msra.mxu0 0.0
          %2701 = vmatprep.subr.mxu0 0.0
          %2702 = vmatpush1.msra.mxu0 0.0
          %2703 = vmatprep.subr.mxu0 0.0
          %2704 = vmatpush1.msra.mxu0 0.0
          %2705 = vmatprep.subr.mxu0 0.0
          %2706 = vmatpush1.msra.mxu0 0.0
          %2707 = vmatprep.mubr.f32.mxu0 0.0
          %2708 = vmatmul.mubr.f32.gmra.mrb[0].mxu0 %v2641
          %v2709 = vpop.f32.mrb[0].mxu0
          %v2710 = vadd.f32 0.0, %v2709
          %v2711 = vpop.f32.mrb[0].mxu0
          %2712 = vdwg.mxu0
          %v2713 = vadd.f32 %v2621, %v2639
          %v2714 = vmul.f32 %v2710, 2.0
          %v2715 = vsub.f32 %v2713, %v2714
          %v2716 = vmax.f32 %v2715, 0.0
          %v2717 = vadd.f32 %v2716, 1.0
          %v2718 = vadd.f32 %v2717, 1e-08
          %v2719 = vrcp.pop %v2718
          %v2720 = vmul.f32 %v2719, %v2719
          %v2721 = vsel %vm2626, %v2720, 0.0
          %2722 = vadd.xlane.f32.xlu0 %v2721
          %v2723 = vpop.xlane.xlu0 %2722
          %v2724 = vrcp.pop %v2723
          %v2725 = vmul.f32 %v2720, %v2724
          %2726 = vst.msk [vmem:[#allocation4] sm:$0xff] %vm597, %v2608
          %2727 = vst.msk [vmem:[%s11] sm:$0xff] %vm2626, %v2725
        $region68: #{tpu_custom_call.1} parent=59 // pred_fallthru
          _
        // Predicated region
        $region69: #{tpu_custom_call.1} parent=59 // pred_check
          %p2728 = pneg %p272
        $region70: #{tpu_custom_call.1} parent=59 // pred_check_branch
          %2730 = sbr.rel (%p2728) target = $region72
        $region71: #{tpu_custom_call.1} parent=59 // pred_region
          %s2732 = ssub.s32 128, 128
          %2733 = vsyncadd [#allocation5], %s2732
          %s2735 = sshll.u32 [#allocation4], 4
          %s2736 = int_to_ptr.vmem [resolvable:$true] %s2735
          %2738 = dma.vmem_to_hbm [thread:$0]  %s2736, 128, %s10, [#allocation5]
        $region72: #{tpu_custom_call.1} parent=59 // pred_fallthru
          _
        // Predicated region
        $region73: #{tpu_custom_call.1} parent=59 // pred_check
          %p2739 = pneg %p293
        $region74: #{tpu_custom_call.1} parent=59 // pred_check_branch
          %2741 = sbr.rel (%p2739) target = $region76
        $region75: #{tpu_custom_call.1} parent=59 // pred_region
          _
        $region76: #{tpu_custom_call.1} parent=59 // pred_fallthru
          _
        // Predicated region
        $region77: #{tpu_custom_call.1} parent=59 // pred_check
          %p2742 = pneg %p272
        $region78: #{tpu_custom_call.1} parent=59 // pred_check_branch
          %2744 = sbr.rel (%p2742) target = $region80
        $region79: #{tpu_custom_call.1} parent=59 // pred_region
          %2745 = dma.done [#allocation5], 128
        $region80: #{tpu_custom_call.1} parent=59 // pred_fallthru
          _
        // Predicated region
        $region81: #{tpu_custom_call.1} parent=59 // pred_check
          %p2746 = pneg %p293
        $region82: #{tpu_custom_call.1} parent=59 // pred_check_branch
          %2748 = sbr.rel (%p2746) target = $region84
        $region83: #{tpu_custom_call.1} parent=59 // pred_region
          _
        $region84: #{tpu_custom_call.1} parent=59 // pred_fallthru
          _
      $region60: #{tpu_custom_call.1} parent=5 // pred_fallthru
        _
      %p2749 = scmp.le.s32.totalorder 2, %s19
      // Predicated region
      $region85: #{tpu_custom_call.1} parent=5 // pred_check
        %p2750 = pneg %p2749
      $region86: #{tpu_custom_call.1} parent=5 // pred_check_branch
        %2752 = sbr.rel (%p2750) target = $region88
      $region87: #{tpu_custom_call.1} parent=5 // pred_region
        %s2753 = ssub.s32 %s19, 2
      $region88: #{tpu_custom_call.1} parent=5 // pred_fallthru
        _
    $region6: #{tpu_custom_call.1} parent=1 // loop_footer
      %s23 = sadd.s32 1, %s19
    $region7: #{tpu_custom_call.1} parent=1 // loop_footer_branch
      %18 = sbr.rel target = $region3
    $region8: #{tpu_custom_call.1} parent=1 // loop_exit
      _
    %2754 = vsyncpa [#allocation5], 1
    %s2755 = scalar_lea.sflag [#allocation5], 1
    %2756 = vsyncpa %s2755, 1

</llo_original>
